<compile_context>
chip_gen: v6e
topology: v6e:2x2x1
jax: 0.10.0
libtpu: 0.0.40
codegen_flags: <defaults>
</compile_context>

<pallas_src>
import jax
import jax.numpy as jnp
import numpy as np
from jax.experimental import pallas as pl
from jax.experimental.pallas import tpu as pltpu

VOCAB = 32
EMBED = 32
HIDDEN = 32
LAYERS = 2
BATCH = 2
SEQ = 8

BP = 8        # f32 sublane tile: pad batch 2 -> 8 so every per-step tile is (8, *)
LANES = 128   # lane width of the packed output slab


def lstm_wave_kernel(proj_ref, state0_ref, wbig_ref, wlin_ref, blin_ref,
                     out_ref, seq_buf):
    """2-layer LSTM wavefront + fused Linear head, whole problem VMEM-resident.

    proj_ref  : ((T+1)*BP, 8H) per-wave additive gate terms, gate-interleaved columns
                [i0 i1 f0 f1 g0 g1 o0 o1]; layer-0 cols hold x@Wih0+b0 at t=s (zeros at
                s=T), layer-1 cols hold b1; g columns pre-scaled by 2.
    state0_ref: (BP, 4H) packed initial state lanes [h_l0 | h_l1 | c_l0 | c_l1].
    wbig_ref  : (2H, 8H) block recurrent weight [[Whh0, Wih1], [0, Whh1]],
                gate-interleaved columns, g columns pre-scaled by 2.
    wlin_ref  : (H, 128) final Linear weight, lane-padded (cols >= V are zero).
    blin_ref  : (1, 128) final Linear bias, lane-padded.
    out_ref   : ((T+1)*BP, 128): rows [0, T*BP) = logits (time-major, batch-padded),
                rows [T*BP, (T+1)*BP) = packed final state [h_l0|h_l1|c_l0|c_l1].
    seq_buf   : VMEM (T*BP, H) top-layer per-step outputs (input to the Linear head).
    """
    WBP, G8 = proj_ref.shape
    BPk = state0_ref.shape[0]
    H2 = G8 // 4                       # 2H (both layers, one gate)
    H = H2 // 2
    T = WBP // BPk - 1

    w_big = wbig_ref[...]                                   # (2H, 8H)
    st0 = state0_ref[...]                                   # (BP, 4H)
    h_cat = st0[:, 0:H2]                                    # [h_l0 | h_l1]
    c_cat = st0[:, H2:2 * H2]                               # [c_l0 | c_l1]

    lane = jax.lax.broadcasted_iota(jnp.int32, (BPk, H2), 1)
    is_l0 = lane < H                                        # layer-0 lanes

    # Wavefront: step s computes layer0@t=s and layer1@t=s-1; T+L-1 = 9 serial MXU
    # round-trips instead of L*T = 16.  Fully unrolled -> all offsets static.
    for s in range(T + 1):
        big = (jnp.dot(h_cat, w_big, preferred_element_type=jnp.float32)
               + proj_ref[pl.ds(s * BPk, BPk), :])          # (BP, 8H), whole-tile read
        sig = jax.nn.sigmoid(big)                           # ONE full-width sigmoid
        i_cat = sig[:, 0 * H2:1 * H2]
        f_cat = sig[:, 1 * H2:2 * H2]
        g_cat = 2.0 * sig[:, 2 * H2:3 * H2] - 1.0           # tanh via 2*sigmoid(2x)-1
        o_cat = sig[:, 3 * H2:4 * H2]
        c_new = f_cat * c_cat + i_cat * g_cat               # (BP, 2H), lane-aligned
        h_new = o_cat * jnp.tanh(c_new)
        if s == 0:                     # layer-1 half is a discarded warm-up value
            c_cat = jnp.where(is_l0, c_new, c_cat)
            h_cat = jnp.where(is_l0, h_new, h_cat)
        elif s == T:                   # layer-0 half would be t=T (doesn't exist)
            c_cat = jnp.where(is_l0, c_cat, c_new)
            h_cat = jnp.where(is_l0, h_cat, h_new)
        else:
            c_cat = c_new
            h_cat = h_new
        if s >= 1:                     # top-layer output h1(t=s-1) -> Linear head
            seq_buf[pl.ds((s - 1) * BPk, BPk), :] = h_cat[:, H:H2]

    # Fused Linear head: one (T*BP, H) @ (H, 128) matmul; lane-padded weight makes the
    # logits store an unmasked full-lane vst.
    out_ref[pl.ds(0, T * BPk), :] = (
        jnp.dot(seq_buf[...], wlin_ref[...], preferred_element_type=jnp.float32)
        + blin_ref[...])
    # Packed final states in one full-lane (BP, 128) row block.
    out_ref[pl.ds(T * BPk, BPk), :] = jnp.concatenate([h_cat, c_cat], axis=1)


def lstm_forward(x_ids, h0, c0, embed_w, w_ih, w_hh, b_ih, b_hh, w_lin, b_lin):
    """PyTorch-semantics forward: embed -> 2-layer LSTM (batch_first) -> Linear."""
    B, T = x_ids.shape
    L, _, H = h0.shape
    V = w_lin.shape[0]
    assert L == 2, "wavefront kernel is specialized to num_layers == 2"
    assert B <= BP and 4 * H <= LANES
    f32 = jnp.float32
    hp = jax.lax.Precision.HIGHEST

    def gate(a, k):                    # gate-k column block of a (..., 4H) array
        return a[..., k * H:(k + 1) * H]

    def pad_b(a):                      # (B, X) -> (BP, X) zero row padding
        return jnp.pad(a.astype(f32), ((0, BP - B), (0, 0)))

    # Layer-0 input projection folded into the embedding table (gather stays in XLA).
    b0 = (b_ih[0] + b_hh[0]).astype(f32)
    proj_table = jnp.dot(embed_w.astype(f32), w_ih[0].T.astype(f32),
                         precision=hp) + b0                        # (VOCAB, 4H)
    proj0 = proj_table[x_ids]                                      # (B, T, 4H)
    proj0 = jnp.transpose(proj0, (1, 0, 2))                        # (T, B, 4H)
    proj0 = jnp.pad(proj0, ((0, 0), (0, BP - B), (0, 0)))          # (T, BP, 4H)
    proj0 = jnp.concatenate(
        [proj0, jnp.zeros((1, BP, 4 * H), f32)], axis=0)           # (T+1, BP, 4H)

    b1 = jnp.broadcast_to((b_ih[1] + b_hh[1]).astype(f32),
                          (T + 1, BP, 4 * H))                      # (T+1, BP, 4H)

    # Per-wave additive gate slab, gate-interleaved [i0 i1 f0 f1 g0 g1 o0 o1];
    # g columns scaled by 2 (tanh(x) = 2*sigmoid(2x)-1; power-of-two scale => exact).
    proj_slab = jnp.concatenate(
        [gate(proj0, 0), gate(b1, 0),
         gate(proj0, 1), gate(b1, 1),
         2.0 * gate(proj0, 2), 2.0 * gate(b1, 2),
         gate(proj0, 3), gate(b1, 3)], axis=-1
    ).reshape((T + 1) * BP, 8 * H)

    # Block wavefront recurrent weight (2H, 8H): rows 0:H multiply h_l0 (Whh0 for the
    # layer-0 gates, Wih1 for the layer-1 gates), rows H:2H multiply h_l1 (Whh1).
    whh0 = w_hh[0].T.astype(f32)                                   # (H, 4H)
    whh1 = w_hh[1].T.astype(f32)
    wih1 = w_ih[1].T.astype(f32)                                   # (H, 4H)
    z = jnp.zeros((H, H), f32)
    top = jnp.concatenate(
        [gate(whh0, 0), gate(wih1, 0), gate(whh0, 1), gate(wih1, 1),
         2.0 * gate(whh0, 2), 2.0 * gate(wih1, 2), gate(whh0, 3), gate(wih1, 3)],
        axis=1)
    bot = jnp.concatenate(
        [z, gate(whh1, 0), z, gate(whh1, 1),
         z, 2.0 * gate(whh1, 2), z, gate(whh1, 3)], axis=1)
    w_big = jnp.concatenate([top, bot], axis=0)                    # (2H, 8H)

    # Packed initial state lanes [h_l0 | h_l1 | c_l0 | c_l1] -> (BP, 4H) = (8, 128).
    state0 = jnp.concatenate(
        [pad_b(h0[0]), pad_b(h0[1]), pad_b(c0[0]), pad_b(c0[1])], axis=1)

    # Lane-padded Linear head so the logits store is full-lane.
    wlin_pad = jnp.zeros((H, LANES), f32).at[:, :V].set(w_lin.T.astype(f32))
    blin_pad = jnp.zeros((1, LANES), f32).at[:, :V].set(b_lin.astype(f32))

    out = pl.pallas_call(
        lstm_wave_kernel,
        out_shape=jax.ShapeDtypeStruct(((T + 1) * BP, LANES), f32),
        in_specs=[pl.BlockSpec(memory_space=pltpu.MemorySpace.VMEM)] * 5,
        out_specs=pl.BlockSpec(memory_space=pltpu.MemorySpace.VMEM),
        scratch_shapes=[pltpu.VMEM((T * BP, H), f32)],
    )(proj_slab, state0, w_big, wlin_pad, blin_pad)

    # Unpack: logits time-major (T, BP, V) -> torch's batch-major (B*T, V) rows.
    logits = out[:T * BP, :V].reshape(T, BP, V)[:, :B]
    logits = jnp.transpose(logits, (1, 0, 2)).reshape(B * T, V)
    tail = out[T * BP:, :]                                         # (BP, 128)
    h_n = jnp.stack([tail[:B, 0:H], tail[:B, H:2 * H]])            # (L, B, H)
    c_n = jnp.stack([tail[:B, 2 * H:3 * H], tail[:B, 3 * H:4 * H]])
    return logits, (h_n, c_n)


def lstm_ref(x_ids, h0, c0, embed_w, w_ih, w_hh, b_ih, b_hh, w_lin, b_lin):
    """Pure-JAX reference reproducing torch.nn.LSTM (batch_first) semantics."""
    hp = jax.lax.Precision.HIGHEST
    x = embed_w[x_ids]                                             # (B, T, E)
    B, T, _ = x.shape
    L, _, H = h0.shape
    hs, cs = list(h0), list(c0)
    inp = x
    for l in range(L):
        h, c = hs[l], cs[l]
        outs = []
        for t in range(T):
            xt = inp[:, t, :]
            gates = (jnp.dot(xt, w_ih[l].T, precision=hp) + b_ih[l]
                     + jnp.dot(h, w_hh[l].T, precision=hp) + b_hh[l])
            i = jax.nn.sigmoid(gates[:, :H])
            f = jax.nn.sigmoid(gates[:, H:2 * H])
            g = jnp.tanh(gates[:, 2 * H:3 * H])
            o = jax.nn.sigmoid(gates[:, 3 * H:])
            c = f * c + i * g
            h = o * jnp.tanh(c)
            outs.append(h)
        inp = jnp.stack(outs, axis=1)
        hs[l], cs[l] = h, c
    out = jnp.dot(inp.reshape(B * T, H), w_lin.T, precision=hp) + b_lin
    return out, jnp.stack(hs), jnp.stack(cs)


if __name__ == "__main__":
    key = jax.random.PRNGKey(0)
    ks = jax.random.split(key, 10)
    k = 1.0 / np.sqrt(HIDDEN)

    # Deterministic parameter init (PyTorch-style distributions, fixed seed).
    embed_w = jax.random.normal(ks[0], (VOCAB, EMBED), jnp.float32)
    w_ih = jax.random.uniform(ks[1], (LAYERS, 4 * HIDDEN, EMBED), jnp.float32, -k, k)
    w_hh = jax.random.uniform(ks[2], (LAYERS, 4 * HIDDEN, HIDDEN), jnp.float32, -k, k)
    b_ih = jax.random.uniform(ks[3], (LAYERS, 4 * HIDDEN), jnp.float32, -k, k)
    b_hh = jax.random.uniform(ks[4], (LAYERS, 4 * HIDDEN), jnp.float32, -k, k)
    w_lin = jax.random.uniform(ks[5], (VOCAB, HIDDEN), jnp.float32, -k, k)
    b_lin = jax.random.uniform(ks[6], (VOCAB,), jnp.float32, -k, k)

    # Inputs: token ids + (h0, c0)
    x_ids = jax.random.randint(ks[7], (BATCH, SEQ), 0, VOCAB, jnp.int32)
    h0 = jax.random.normal(ks[8], (LAYERS, BATCH, HIDDEN), jnp.float32)
    c0 = jax.random.normal(ks[9], (LAYERS, BATCH, HIDDEN), jnp.float32)

    logits, (h_n, c_n) = lstm_forward(x_ids, h0, c0, embed_w, w_ih, w_hh,
                                      b_ih, b_hh, w_lin, b_lin)
    jax.block_until_ready((logits, h_n, c_n))

    # Correctness check against a pure-JAX reference of the PyTorch semantics.
    ref_out, ref_h, ref_c = lstm_ref(x_ids, h0, c0, embed_w, w_ih, w_hh,
                                     b_ih, b_hh, w_lin, b_lin)
    np.testing.assert_allclose(np.asarray(logits), np.asarray(ref_out), atol=1e-4, rtol=1e-4)
    np.testing.assert_allclose(np.asarray(h_n), np.asarray(ref_h), atol=1e-4, rtol=1e-4)
    np.testing.assert_allclose(np.asarray(c_n), np.asarray(ref_c), atol=1e-4, rtol=1e-4)

    print("KERNEL_OK")
</pallas_src>

<mosaic_0001>
module attributes {stable_mosaic.version = 11 : i64} {
  func.func @lstm_wave_kernel(%arg0: memref<72x256xf32, #tpu.memory_space<vmem>>, %arg1: memref<8x128xf32, #tpu.memory_space<vmem>>, %arg2: memref<64x256xf32, #tpu.memory_space<vmem>>, %arg3: memref<32x128xf32, #tpu.memory_space<vmem>>, %arg4: memref<1x128xf32, #tpu.memory_space<vmem>>, %arg5: memref<72x128xf32, #tpu.memory_space<vmem>>, %arg6: memref<64x32xf32, #tpu.memory_space<vmem>>) attributes {dimension_semantics = [], scalar_prefetch = 0 : i64, scratch_operands = 1 : i64, tpu.core_type = #tpu.core_type<tc>} {
    %c0 = arith.constant 0 : index
    %c0_0 = arith.constant 0 : index
    %0 = vector.load %arg2[%c0, %c0_0] : memref<64x256xf32, #tpu.memory_space<vmem>>, vector<64x256xf32>
    %c0_1 = arith.constant 0 : index
    %c0_2 = arith.constant 0 : index
    %1 = vector.load %arg1[%c0_1, %c0_2] : memref<8x128xf32, #tpu.memory_space<vmem>>, vector<8x128xf32>
    %2 = vector.extract_strided_slice %1 {offsets = [0, 0], sizes = [8, 64], strides = [1, 1]} : vector<8x128xf32> to vector<8x64xf32>
    %3 = vector.extract_strided_slice %1 {offsets = [0, 64], sizes = [8, 64], strides = [1, 1]} : vector<8x128xf32> to vector<8x64xf32>
    %4 = tpu.iota {dimensions = array<i32: 1>} : vector<8x64xi32>
    %c32_i32 = arith.constant 32 : i32
    %5 = vector.broadcast %c32_i32 : i32 to vector<8x64xi32>
    %6 = arith.cmpi slt, %4, %5 : vector<8x64xi32>
    %cst = arith.constant dense<0.000000e+00> : vector<8x256xf32>
    %7 = tpu.matmul %2, %0, %cst {dimension_numbers = #tpu.dot_dimension_numbers<[1], [0], [0], [1], [0, 0, 1, 1], [], []>} : vector<8x64xf32>, vector<64x256xf32>, vector<8x256xf32> -> vector<8x256xf32>
    %c0_3 = arith.constant 0 : index
    %c0_4 = arith.constant 0 : index
    %8 = vector.load %arg0[%c0_3, %c0_4] : memref<72x256xf32, #tpu.memory_space<vmem>>, vector<8x256xf32>
    %9 = arith.addf %7, %8 : vector<8x256xf32>
    %10 = arith.negf %9 : vector<8x256xf32>
    %11 = math.exp %10 : vector<8x256xf32>
    %cst_5 = arith.constant 1.000000e+00 : f32
    %12 = vector.broadcast %cst_5 : f32 to vector<8x256xf32>
    %13 = arith.addf %12, %11 : vector<8x256xf32>
    %14 = arith.divf %12, %13 : vector<8x256xf32>
    %15 = vector.extract_strided_slice %14 {offsets = [0, 0], sizes = [8, 64], strides = [1, 1]} : vector<8x256xf32> to vector<8x64xf32>
    %16 = vector.extract_strided_slice %14 {offsets = [0, 64], sizes = [8, 64], strides = [1, 1]} : vector<8x256xf32> to vector<8x64xf32>
    %17 = vector.extract_strided_slice %14 {offsets = [0, 128], sizes = [8, 64], strides = [1, 1]} : vector<8x256xf32> to vector<8x64xf32>
    %cst_6 = arith.constant 2.000000e+00 : f32
    %18 = vector.broadcast %cst_6 : f32 to vector<8x64xf32>
    %19 = arith.mulf %18, %17 : vector<8x64xf32>
    %cst_7 = arith.constant 1.000000e+00 : f32
    %20 = vector.broadcast %cst_7 : f32 to vector<8x64xf32>
    %21 = arith.subf %19, %20 : vector<8x64xf32>
    %22 = vector.extract_strided_slice %14 {offsets = [0, 192], sizes = [8, 64], strides = [1, 1]} : vector<8x256xf32> to vector<8x64xf32>
    %23 = arith.mulf %16, %3 : vector<8x64xf32>
    %24 = arith.mulf %15, %21 : vector<8x64xf32>
    %25 = arith.addf %23, %24 : vector<8x64xf32>
    %26 = math.tanh %25 : vector<8x64xf32>
    %27 = arith.mulf %22, %26 : vector<8x64xf32>
    %28 = arith.select %6, %25, %3 : vector<8x64xi1>, vector<8x64xf32>
    %29 = arith.select %6, %27, %2 : vector<8x64xi1>, vector<8x64xf32>
    %cst_8 = arith.constant dense<0.000000e+00> : vector<8x256xf32>
    %30 = tpu.matmul %29, %0, %cst_8 {dimension_numbers = #tpu.dot_dimension_numbers<[1], [0], [0], [1], [0, 0, 1, 1], [], []>} : vector<8x64xf32>, vector<64x256xf32>, vector<8x256xf32> -> vector<8x256xf32>
    %c8 = arith.constant 8 : index
    %c0_9 = arith.constant 0 : index
    %31 = vector.load %arg0[%c8, %c0_9] : memref<72x256xf32, #tpu.memory_space<vmem>>, vector<8x256xf32>
    %32 = arith.addf %30, %31 : vector<8x256xf32>
    %33 = arith.negf %32 : vector<8x256xf32>
    %34 = math.exp %33 : vector<8x256xf32>
    %cst_10 = arith.constant 1.000000e+00 : f32
    %35 = vector.broadcast %cst_10 : f32 to vector<8x256xf32>
    %36 = arith.addf %35, %34 : vector<8x256xf32>
    %37 = arith.divf %35, %36 : vector<8x256xf32>
    %38 = vector.extract_strided_slice %37 {offsets = [0, 0], sizes = [8, 64], strides = [1, 1]} : vector<8x256xf32> to vector<8x64xf32>
    %39 = vector.extract_strided_slice %37 {offsets = [0, 64], sizes = [8, 64], strides = [1, 1]} : vector<8x256xf32> to vector<8x64xf32>
    %40 = vector.extract_strided_slice %37 {offsets = [0, 128], sizes = [8, 64], strides = [1, 1]} : vector<8x256xf32> to vector<8x64xf32>
    %cst_11 = arith.constant 2.000000e+00 : f32
    %41 = vector.broadcast %cst_11 : f32 to vector<8x64xf32>
    %42 = arith.mulf %41, %40 : vector<8x64xf32>
    %cst_12 = arith.constant 1.000000e+00 : f32
    %43 = vector.broadcast %cst_12 : f32 to vector<8x64xf32>
    %44 = arith.subf %42, %43 : vector<8x64xf32>
    %45 = vector.extract_strided_slice %37 {offsets = [0, 192], sizes = [8, 64], strides = [1, 1]} : vector<8x256xf32> to vector<8x64xf32>
    %46 = arith.mulf %39, %28 : vector<8x64xf32>
    %47 = arith.mulf %38, %44 : vector<8x64xf32>
    %48 = arith.addf %46, %47 : vector<8x64xf32>
    %49 = math.tanh %48 : vector<8x64xf32>
    %50 = arith.mulf %45, %49 : vector<8x64xf32>
    %51 = vector.extract_strided_slice %50 {offsets = [0, 32], sizes = [8, 32], strides = [1, 1]} : vector<8x64xf32> to vector<8x32xf32>
    %c0_13 = arith.constant 0 : index
    %c0_14 = arith.constant 0 : index
    %52 = vector.load %arg6[%c0_13, %c0_14] : memref<64x32xf32, #tpu.memory_space<vmem>>, vector<8x32xf32>
    tpu.vector_store %arg6[%c0_13, %c0_14], %51 {strides = array<i32>} : memref<64x32xf32, #tpu.memory_space<vmem>>, vector<8x32xf32>,
    %cst_15 = arith.constant dense<0.000000e+00> : vector<8x256xf32>
    %53 = tpu.matmul %50, %0, %cst_15 {dimension_numbers = #tpu.dot_dimension_numbers<[1], [0], [0], [1], [0, 0, 1, 1], [], []>} : vector<8x64xf32>, vector<64x256xf32>, vector<8x256xf32> -> vector<8x256xf32>
    %c16 = arith.constant 16 : index
    %c0_16 = arith.constant 0 : index
    %54 = vector.load %arg0[%c16, %c0_16] : memref<72x256xf32, #tpu.memory_space<vmem>>, vector<8x256xf32>
    %55 = arith.addf %53, %54 : vector<8x256xf32>
    %56 = arith.negf %55 : vector<8x256xf32>
    %57 = math.exp %56 : vector<8x256xf32>
    %cst_17 = arith.constant 1.000000e+00 : f32
    %58 = vector.broadcast %cst_17 : f32 to vector<8x256xf32>
    %59 = arith.addf %58, %57 : vector<8x256xf32>
    %60 = arith.divf %58, %59 : vector<8x256xf32>
    %61 = vector.extract_strided_slice %60 {offsets = [0, 0], sizes = [8, 64], strides = [1, 1]} : vector<8x256xf32> to vector<8x64xf32>
    %62 = vector.extract_strided_slice %60 {offsets = [0, 64], sizes = [8, 64], strides = [1, 1]} : vector<8x256xf32> to vector<8x64xf32>
    %63 = vector.extract_strided_slice %60 {offsets = [0, 128], sizes = [8, 64], strides = [1, 1]} : vector<8x256xf32> to vector<8x64xf32>
    %cst_18 = arith.constant 2.000000e+00 : f32
    %64 = vector.broadcast %cst_18 : f32 to vector<8x64xf32>
    %65 = arith.mulf %64, %63 : vector<8x64xf32>
    %cst_19 = arith.constant 1.000000e+00 : f32
    %66 = vector.broadcast %cst_19 : f32 to vector<8x64xf32>
    %67 = arith.subf %65, %66 : vector<8x64xf32>
    %68 = vector.extract_strided_slice %60 {offsets = [0, 192], sizes = [8, 64], strides = [1, 1]} : vector<8x256xf32> to vector<8x64xf32>
    %69 = arith.mulf %62, %48 : vector<8x64xf32>
    %70 = arith.mulf %61, %67 : vector<8x64xf32>
    %71 = arith.addf %69, %70 : vector<8x64xf32>
    %72 = math.tanh %71 : vector<8x64xf32>
    %73 = arith.mulf %68, %72 : vector<8x64xf32>
    %74 = vector.extract_strided_slice %73 {offsets = [0, 32], sizes = [8, 32], strides = [1, 1]} : vector<8x64xf32> to vector<8x32xf32>
    %c8_20 = arith.constant 8 : index
    %c0_21 = arith.constant 0 : index
    %75 = vector.load %arg6[%c8_20, %c0_21] : memref<64x32xf32, #tpu.memory_space<vmem>>, vector<8x32xf32>
    tpu.vector_store %arg6[%c8_20, %c0_21], %74 {strides = array<i32>} : memref<64x32xf32, #tpu.memory_space<vmem>>, vector<8x32xf32>,
    %cst_22 = arith.constant dense<0.000000e+00> : vector<8x256xf32>
    %76 = tpu.matmul %73, %0, %cst_22 {dimension_numbers = #tpu.dot_dimension_numbers<[1], [0], [0], [1], [0, 0, 1, 1], [], []>} : vector<8x64xf32>, vector<64x256xf32>, vector<8x256xf32> -> vector<8x256xf32>
    %c24 = arith.constant 24 : index
    %c0_23 = arith.constant 0 : index
    %77 = vector.load %arg0[%c24, %c0_23] : memref<72x256xf32, #tpu.memory_space<vmem>>, vector<8x256xf32>
    %78 = arith.addf %76, %77 : vector<8x256xf32>
    %79 = arith.negf %78 : vector<8x256xf32>
    %80 = math.exp %79 : vector<8x256xf32>
    %cst_24 = arith.constant 1.000000e+00 : f32
    %81 = vector.broadcast %cst_24 : f32 to vector<8x256xf32>
    %82 = arith.addf %81, %80 : vector<8x256xf32>
    %83 = arith.divf %81, %82 : vector<8x256xf32>
    %84 = vector.extract_strided_slice %83 {offsets = [0, 0], sizes = [8, 64], strides = [1, 1]} : vector<8x256xf32> to vector<8x64xf32>
    %85 = vector.extract_strided_slice %83 {offsets = [0, 64], sizes = [8, 64], strides = [1, 1]} : vector<8x256xf32> to vector<8x64xf32>
    %86 = vector.extract_strided_slice %83 {offsets = [0, 128], sizes = [8, 64], strides = [1, 1]} : vector<8x256xf32> to vector<8x64xf32>
    %cst_25 = arith.constant 2.000000e+00 : f32
    %87 = vector.broadcast %cst_25 : f32 to vector<8x64xf32>
    %88 = arith.mulf %87, %86 : vector<8x64xf32>
    %cst_26 = arith.constant 1.000000e+00 : f32
    %89 = vector.broadcast %cst_26 : f32 to vector<8x64xf32>
    %90 = arith.subf %88, %89 : vector<8x64xf32>
    %91 = vector.extract_strided_slice %83 {offsets = [0, 192], sizes = [8, 64], strides = [1, 1]} : vector<8x256xf32> to vector<8x64xf32>
    %92 = arith.mulf %85, %71 : vector<8x64xf32>
    %93 = arith.mulf %84, %90 : vector<8x64xf32>
    %94 = arith.addf %92, %93 : vector<8x64xf32>
    %95 = math.tanh %94 : vector<8x64xf32>
    %96 = arith.mulf %91, %95 : vector<8x64xf32>
    %97 = vector.extract_strided_slice %96 {offsets = [0, 32], sizes = [8, 32], strides = [1, 1]} : vector<8x64xf32> to vector<8x32xf32>
    %c16_27 = arith.constant 16 : index
    %c0_28 = arith.constant 0 : index
    %98 = vector.load %arg6[%c16_27, %c0_28] : memref<64x32xf32, #tpu.memory_space<vmem>>, vector<8x32xf32>
    tpu.vector_store %arg6[%c16_27, %c0_28], %97 {strides = array<i32>} : memref<64x32xf32, #tpu.memory_space<vmem>>, vector<8x32xf32>,
    %cst_29 = arith.constant dense<0.000000e+00> : vector<8x256xf32>
    %99 = tpu.matmul %96, %0, %cst_29 {dimension_numbers = #tpu.dot_dimension_numbers<[1], [0], [0], [1], [0, 0, 1, 1], [], []>} : vector<8x64xf32>, vector<64x256xf32>, vector<8x256xf32> -> vector<8x256xf32>
    %c32 = arith.constant 32 : index
    %c0_30 = arith.constant 0 : index
    %100 = vector.load %arg0[%c32, %c0_30] : memref<72x256xf32, #tpu.memory_space<vmem>>, vector<8x256xf32>
    %101 = arith.addf %99, %100 : vector<8x256xf32>
    %102 = arith.negf %101 : vector<8x256xf32>
    %103 = math.exp %102 : vector<8x256xf32>
    %cst_31 = arith.constant 1.000000e+00 : f32
    %104 = vector.broadcast %cst_31 : f32 to vector<8x256xf32>
    %105 = arith.addf %104, %103 : vector<8x256xf32>
    %106 = arith.divf %104, %105 : vector<8x256xf32>
    %107 = vector.extract_strided_slice %106 {offsets = [0, 0], sizes = [8, 64], strides = [1, 1]} : vector<8x256xf32> to vector<8x64xf32>
    %108 = vector.extract_strided_slice %106 {offsets = [0, 64], sizes = [8, 64], strides = [1, 1]} : vector<8x256xf32> to vector<8x64xf32>
    %109 = vector.extract_strided_slice %106 {offsets = [0, 128], sizes = [8, 64], strides = [1, 1]} : vector<8x256xf32> to vector<8x64xf32>
    %cst_32 = arith.constant 2.000000e+00 : f32
    %110 = vector.broadcast %cst_32 : f32 to vector<8x64xf32>
    %111 = arith.mulf %110, %109 : vector<8x64xf32>
    %cst_33 = arith.constant 1.000000e+00 : f32
    %112 = vector.broadcast %cst_33 : f32 to vector<8x64xf32>
    %113 = arith.subf %111, %112 : vector<8x64xf32>
    %114 = vector.extract_strided_slice %106 {offsets = [0, 192], sizes = [8, 64], strides = [1, 1]} : vector<8x256xf32> to vector<8x64xf32>
    %115 = arith.mulf %108, %94 : vector<8x64xf32>
    %116 = arith.mulf %107, %113 : vector<8x64xf32>
    %117 = arith.addf %115, %116 : vector<8x64xf32>
    %118 = math.tanh %117 : vector<8x64xf32>
    %119 = arith.mulf %114, %118 : vector<8x64xf32>
    %120 = vector.extract_strided_slice %119 {offsets = [0, 32], sizes = [8, 32], strides = [1, 1]} : vector<8x64xf32> to vector<8x32xf32>
    %c24_34 = arith.constant 24 : index
    %c0_35 = arith.constant 0 : index
    %121 = vector.load %arg6[%c24_34, %c0_35] : memref<64x32xf32, #tpu.memory_space<vmem>>, vector<8x32xf32>
    tpu.vector_store %arg6[%c24_34, %c0_35], %120 {strides = array<i32>} : memref<64x32xf32, #tpu.memory_space<vmem>>, vector<8x32xf32>,
    %cst_36 = arith.constant dense<0.000000e+00> : vector<8x256xf32>
    %122 = tpu.matmul %119, %0, %cst_36 {dimension_numbers = #tpu.dot_dimension_numbers<[1], [0], [0], [1], [0, 0, 1, 1], [], []>} : vector<8x64xf32>, vector<64x256xf32>, vector<8x256xf32> -> vector<8x256xf32>
    %c40 = arith.constant 40 : index
    %c0_37 = arith.constant 0 : index
    %123 = vector.load %arg0[%c40, %c0_37] : memref<72x256xf32, #tpu.memory_space<vmem>>, vector<8x256xf32>
    %124 = arith.addf %122, %123 : vector<8x256xf32>
    %125 = arith.negf %124 : vector<8x256xf32>
    %126 = math.exp %125 : vector<8x256xf32>
    %cst_38 = arith.constant 1.000000e+00 : f32
    %127 = vector.broadcast %cst_38 : f32 to vector<8x256xf32>
    %128 = arith.addf %127, %126 : vector<8x256xf32>
    %129 = arith.divf %127, %128 : vector<8x256xf32>
    %130 = vector.extract_strided_slice %129 {offsets = [0, 0], sizes = [8, 64], strides = [1, 1]} : vector<8x256xf32> to vector<8x64xf32>
    %131 = vector.extract_strided_slice %129 {offsets = [0, 64], sizes = [8, 64], strides = [1, 1]} : vector<8x256xf32> to vector<8x64xf32>
    %132 = vector.extract_strided_slice %129 {offsets = [0, 128], sizes = [8, 64], strides = [1, 1]} : vector<8x256xf32> to vector<8x64xf32>
    %cst_39 = arith.constant 2.000000e+00 : f32
    %133 = vector.broadcast %cst_39 : f32 to vector<8x64xf32>
    %134 = arith.mulf %133, %132 : vector<8x64xf32>
    %cst_40 = arith.constant 1.000000e+00 : f32
    %135 = vector.broadcast %cst_40 : f32 to vector<8x64xf32>
    %136 = arith.subf %134, %135 : vector<8x64xf32>
    %137 = vector.extract_strided_slice %129 {offsets = [0, 192], sizes = [8, 64], strides = [1, 1]} : vector<8x256xf32> to vector<8x64xf32>
    %138 = arith.mulf %131, %117 : vector<8x64xf32>
    %139 = arith.mulf %130, %136 : vector<8x64xf32>
    %140 = arith.addf %138, %139 : vector<8x64xf32>
    %141 = math.tanh %140 : vector<8x64xf32>
    %142 = arith.mulf %137, %141 : vector<8x64xf32>
    %143 = vector.extract_strided_slice %142 {offsets = [0, 32], sizes = [8, 32], strides = [1, 1]} : vector<8x64xf32> to vector<8x32xf32>
    %c32_41 = arith.constant 32 : index
    %c0_42 = arith.constant 0 : index
    %144 = vector.load %arg6[%c32_41, %c0_42] : memref<64x32xf32, #tpu.memory_space<vmem>>, vector<8x32xf32>
    tpu.vector_store %arg6[%c32_41, %c0_42], %143 {strides = array<i32>} : memref<64x32xf32, #tpu.memory_space<vmem>>, vector<8x32xf32>,
    %cst_43 = arith.constant dense<0.000000e+00> : vector<8x256xf32>
    %145 = tpu.matmul %142, %0, %cst_43 {dimension_numbers = #tpu.dot_dimension_numbers<[1], [0], [0], [1], [0, 0, 1, 1], [], []>} : vector<8x64xf32>, vector<64x256xf32>, vector<8x256xf32> -> vector<8x256xf32>
    %c48 = arith.constant 48 : index
    %c0_44 = arith.constant 0 : index
    %146 = vector.load %arg0[%c48, %c0_44] : memref<72x256xf32, #tpu.memory_space<vmem>>, vector<8x256xf32>
    %147 = arith.addf %145, %146 : vector<8x256xf32>
    %148 = arith.negf %147 : vector<8x256xf32>
    %149 = math.exp %148 : vector<8x256xf32>
    %cst_45 = arith.constant 1.000000e+00 : f32
    %150 = vector.broadcast %cst_45 : f32 to vector<8x256xf32>
    %151 = arith.addf %150, %149 : vector<8x256xf32>
    %152 = arith.divf %150, %151 : vector<8x256xf32>
    %153 = vector.extract_strided_slice %152 {offsets = [0, 0], sizes = [8, 64], strides = [1, 1]} : vector<8x256xf32> to vector<8x64xf32>
    %154 = vector.extract_strided_slice %152 {offsets = [0, 64], sizes = [8, 64], strides = [1, 1]} : vector<8x256xf32> to vector<8x64xf32>
    %155 = vector.extract_strided_slice %152 {offsets = [0, 128], sizes = [8, 64], strides = [1, 1]} : vector<8x256xf32> to vector<8x64xf32>
    %cst_46 = arith.constant 2.000000e+00 : f32
    %156 = vector.broadcast %cst_46 : f32 to vector<8x64xf32>
    %157 = arith.mulf %156, %155 : vector<8x64xf32>
    %cst_47 = arith.constant 1.000000e+00 : f32
    %158 = vector.broadcast %cst_47 : f32 to vector<8x64xf32>
    %159 = arith.subf %157, %158 : vector<8x64xf32>
    %160 = vector.extract_strided_slice %152 {offsets = [0, 192], sizes = [8, 64], strides = [1, 1]} : vector<8x256xf32> to vector<8x64xf32>
    %161 = arith.mulf %154, %140 : vector<8x64xf32>
    %162 = arith.mulf %153, %159 : vector<8x64xf32>
    %163 = arith.addf %161, %162 : vector<8x64xf32>
    %164 = math.tanh %163 : vector<8x64xf32>
    %165 = arith.mulf %160, %164 : vector<8x64xf32>
    %166 = vector.extract_strided_slice %165 {offsets = [0, 32], sizes = [8, 32], strides = [1, 1]} : vector<8x64xf32> to vector<8x32xf32>
    %c40_48 = arith.constant 40 : index
    %c0_49 = arith.constant 0 : index
    %167 = vector.load %arg6[%c40_48, %c0_49] : memref<64x32xf32, #tpu.memory_space<vmem>>, vector<8x32xf32>
    tpu.vector_store %arg6[%c40_48, %c0_49], %166 {strides = array<i32>} : memref<64x32xf32, #tpu.memory_space<vmem>>, vector<8x32xf32>,
    %cst_50 = arith.constant dense<0.000000e+00> : vector<8x256xf32>
    %168 = tpu.matmul %165, %0, %cst_50 {dimension_numbers = #tpu.dot_dimension_numbers<[1], [0], [0], [1], [0, 0, 1, 1], [], []>} : vector<8x64xf32>, vector<64x256xf32>, vector<8x256xf32> -> vector<8x256xf32>
    %c56 = arith.constant 56 : index
    %c0_51 = arith.constant 0 : index
    %169 = vector.load %arg0[%c56, %c0_51] : memref<72x256xf32, #tpu.memory_space<vmem>>, vector<8x256xf32>
    %170 = arith.addf %168, %169 : vector<8x256xf32>
    %171 = arith.negf %170 : vector<8x256xf32>
    %172 = math.exp %171 : vector<8x256xf32>
    %cst_52 = arith.constant 1.000000e+00 : f32
    %173 = vector.broadcast %cst_52 : f32 to vector<8x256xf32>
    %174 = arith.addf %173, %172 : vector<8x256xf32>
    %175 = arith.divf %173, %174 : vector<8x256xf32>
    %176 = vector.extract_strided_slice %175 {offsets = [0, 0], sizes = [8, 64], strides = [1, 1]} : vector<8x256xf32> to vector<8x64xf32>
    %177 = vector.extract_strided_slice %175 {offsets = [0, 64], sizes = [8, 64], strides = [1, 1]} : vector<8x256xf32> to vector<8x64xf32>
    %178 = vector.extract_strided_slice %175 {offsets = [0, 128], sizes = [8, 64], strides = [1, 1]} : vector<8x256xf32> to vector<8x64xf32>
    %cst_53 = arith.constant 2.000000e+00 : f32
    %179 = vector.broadcast %cst_53 : f32 to vector<8x64xf32>
    %180 = arith.mulf %179, %178 : vector<8x64xf32>
    %cst_54 = arith.constant 1.000000e+00 : f32
    %181 = vector.broadcast %cst_54 : f32 to vector<8x64xf32>
    %182 = arith.subf %180, %181 : vector<8x64xf32>
    %183 = vector.extract_strided_slice %175 {offsets = [0, 192], sizes = [8, 64], strides = [1, 1]} : vector<8x256xf32> to vector<8x64xf32>
    %184 = arith.mulf %177, %163 : vector<8x64xf32>
    %185 = arith.mulf %176, %182 : vector<8x64xf32>
    %186 = arith.addf %184, %185 : vector<8x64xf32>
    %187 = math.tanh %186 : vector<8x64xf32>
    %188 = arith.mulf %183, %187 : vector<8x64xf32>
    %189 = vector.extract_strided_slice %188 {offsets = [0, 32], sizes = [8, 32], strides = [1, 1]} : vector<8x64xf32> to vector<8x32xf32>
    %c48_55 = arith.constant 48 : index
    %c0_56 = arith.constant 0 : index
    %190 = vector.load %arg6[%c48_55, %c0_56] : memref<64x32xf32, #tpu.memory_space<vmem>>, vector<8x32xf32>
    tpu.vector_store %arg6[%c48_55, %c0_56], %189 {strides = array<i32>} : memref<64x32xf32, #tpu.memory_space<vmem>>, vector<8x32xf32>,
    %cst_57 = arith.constant dense<0.000000e+00> : vector<8x256xf32>
    %191 = tpu.matmul %188, %0, %cst_57 {dimension_numbers = #tpu.dot_dimension_numbers<[1], [0], [0], [1], [0, 0, 1, 1], [], []>} : vector<8x64xf32>, vector<64x256xf32>, vector<8x256xf32> -> vector<8x256xf32>
    %c64 = arith.constant 64 : index
    %c0_58 = arith.constant 0 : index
    %192 = vector.load %arg0[%c64, %c0_58] : memref<72x256xf32, #tpu.memory_space<vmem>>, vector<8x256xf32>
    %193 = arith.addf %191, %192 : vector<8x256xf32>
    %194 = arith.negf %193 : vector<8x256xf32>
    %195 = math.exp %194 : vector<8x256xf32>
    %cst_59 = arith.constant 1.000000e+00 : f32
    %196 = vector.broadcast %cst_59 : f32 to vector<8x256xf32>
    %197 = arith.addf %196, %195 : vector<8x256xf32>
    %198 = arith.divf %196, %197 : vector<8x256xf32>
    %199 = vector.extract_strided_slice %198 {offsets = [0, 0], sizes = [8, 64], strides = [1, 1]} : vector<8x256xf32> to vector<8x64xf32>
    %200 = vector.extract_strided_slice %198 {offsets = [0, 64], sizes = [8, 64], strides = [1, 1]} : vector<8x256xf32> to vector<8x64xf32>
    %201 = vector.extract_strided_slice %198 {offsets = [0, 128], sizes = [8, 64], strides = [1, 1]} : vector<8x256xf32> to vector<8x64xf32>
    %cst_60 = arith.constant 2.000000e+00 : f32
    %202 = vector.broadcast %cst_60 : f32 to vector<8x64xf32>
    %203 = arith.mulf %202, %201 : vector<8x64xf32>
    %cst_61 = arith.constant 1.000000e+00 : f32
    %204 = vector.broadcast %cst_61 : f32 to vector<8x64xf32>
    %205 = arith.subf %203, %204 : vector<8x64xf32>
    %206 = vector.extract_strided_slice %198 {offsets = [0, 192], sizes = [8, 64], strides = [1, 1]} : vector<8x256xf32> to vector<8x64xf32>
    %207 = arith.mulf %200, %186 : vector<8x64xf32>
    %208 = arith.mulf %199, %205 : vector<8x64xf32>
    %209 = arith.addf %207, %208 : vector<8x64xf32>
    %210 = math.tanh %209 : vector<8x64xf32>
    %211 = arith.mulf %206, %210 : vector<8x64xf32>
    %212 = arith.select %6, %186, %209 : vector<8x64xi1>, vector<8x64xf32>
    %213 = arith.select %6, %188, %211 : vector<8x64xi1>, vector<8x64xf32>
    %214 = vector.extract_strided_slice %213 {offsets = [0, 32], sizes = [8, 32], strides = [1, 1]} : vector<8x64xf32> to vector<8x32xf32>
    %c56_62 = arith.constant 56 : index
    %c0_63 = arith.constant 0 : index
    %215 = vector.load %arg6[%c56_62, %c0_63] : memref<64x32xf32, #tpu.memory_space<vmem>>, vector<8x32xf32>
    tpu.vector_store %arg6[%c56_62, %c0_63], %214 {strides = array<i32>} : memref<64x32xf32, #tpu.memory_space<vmem>>, vector<8x32xf32>,
    %c0_64 = arith.constant 0 : index
    %c0_65 = arith.constant 0 : index
    %216 = vector.load %arg6[%c0_64, %c0_65] : memref<64x32xf32, #tpu.memory_space<vmem>>, vector<64x32xf32>
    %c0_66 = arith.constant 0 : index
    %c0_67 = arith.constant 0 : index
    %217 = vector.load %arg3[%c0_66, %c0_67] : memref<32x128xf32, #tpu.memory_space<vmem>>, vector<32x128xf32>
    %cst_68 = arith.constant dense<0.000000e+00> : vector<64x128xf32>
    %218 = tpu.matmul %216, %217, %cst_68 {dimension_numbers = #tpu.dot_dimension_numbers<[1], [0], [0], [1], [0, 0, 1, 1], [], []>} : vector<64x32xf32>, vector<32x128xf32>, vector<64x128xf32> -> vector<64x128xf32>
    %c0_69 = arith.constant 0 : index
    %c0_70 = arith.constant 0 : index
    %219 = vector.load %arg4[%c0_69, %c0_70] : memref<1x128xf32, #tpu.memory_space<vmem>>, vector<1x128xf32>
    %220 = vector.broadcast %219 : vector<1x128xf32> to vector<64x128xf32>
    %221 = arith.addf %218, %220 : vector<64x128xf32>
    %c0_71 = arith.constant 0 : index
    %c0_72 = arith.constant 0 : index
    %222 = vector.load %arg5[%c0_71, %c0_72] : memref<72x128xf32, #tpu.memory_space<vmem>>, vector<64x128xf32>
    tpu.vector_store %arg5[%c0_71, %c0_72], %221 {strides = array<i32>} : memref<72x128xf32, #tpu.memory_space<vmem>>, vector<64x128xf32>,
    %223 = tpu.concatenate %213, %212 in 1 : vector<8x64xf32>, vector<8x64xf32> -> vector<8x128xf32>
    %c64_73 = arith.constant 64 : index
    %c0_74 = arith.constant 0 : index
    %224 = vector.load %arg5[%c64_73, %c0_74] : memref<72x128xf32, #tpu.memory_space<vmem>>, vector<8x128xf32>
    tpu.vector_store %arg5[%c64_73, %c0_74], %223 {strides = array<i32>} : memref<72x128xf32, #tpu.memory_space<vmem>>, vector<8x128xf32>,
    return
  }
}

</mosaic_0001>

<llo_original>
// kernel: tpu_custom_call.1
$region0: #{tpu_custom_call.1}
  #allocation0 [shape = 'u32[]', space=smem, size = 0x4, offset = 0x4, fixed_abs, tag = 'smem constant byte address 0x4 - core index']
  #allocation1 [shape = 'u32[144,128]{1,0:T(1,128)}', space=vmem, size = 0x12000, scoped, tag = 'internal scratch']
  #allocation2 [shape = 'f32[64,32]{1,0:T(8,128)}', space=vmem, size = 0x8000, scoped, tag = 'scratch operand']
  %s0 = inlined_call_operand.hbm [shape: f32[72,256], index: 0, kind: input, shape index: {}]
  %s1 = inlined_call_operand.hbm [shape: f32[8,128], index: 1, kind: input, shape index: {}]
  %s2 = inlined_call_operand.hbm [shape: f32[64,256], index: 2, kind: input, shape index: {}]
  %s3 = inlined_call_operand.hbm [shape: f32[32,128], index: 3, kind: input, shape index: {}]
  %s4 = inlined_call_operand.vmem [shape: f32[1,128], index: 4, kind: input, shape index: {}]
  %s5 = inlined_call_operand.hbm [shape: f32[72,128], index: 5, kind: output, shape index: {}]
  %s6 = sld [smem:[#allocation0]]
  $region46: #{tpu_custom_call.1} parent=0
    _
  %s8 = ssub.s32 1, %s6
  %s9 = scalar_select 0, %s8, %s6
  $region1: #{tpu_custom_call.1} parent=0
    #allocation3 [shape = 'u8[73728]{0}', space=vmem, size = 0x12000, scoped, tag = 'input window, operand 0, single buffered']
    #allocation4 [shape = 's32[1]{0}', space=sflag, size = 0x4, scoped, tag = 'scoped memory for tpu_custom_call.1']
    #allocation5 [shape = 's32[1]{0}', space=sflag, size = 0x4, scoped, tag = 'scoped memory for tpu_custom_call.1']
    #allocation6 [shape = 'u8[4096]{0}', space=vmem, size = 0x1000, scoped, tag = 'input window, operand 1, single buffered']
    #allocation7 [shape = 's32[1]{0}', space=sflag, size = 0x4, scoped, tag = 'scoped memory for tpu_custom_call.1']
    #allocation8 [shape = 'u8[65536]{0}', space=vmem, size = 0x10000, scoped, tag = 'input window, operand 2, single buffered']
    #allocation9 [shape = 'u8[16384]{0}', space=vmem, size = 0x4000, scoped, tag = 'input window, operand 3, single buffered']
    #allocation10 [shape = 's32[1]{0}', space=sflag, size = 0x4, scoped, tag = 'scoped memory for tpu_custom_call.1']
    #allocation11 [shape = 'u8[36864]{0}', space=vmem, size = 0x9000, scoped, tag = 'output window, operand 0, single buffered']
    %10 = vsyncpa [#allocation4], 0
    %11 = vsyncpa [#allocation7], 0
    %12 = vsyncpa [#allocation10], 0
    %13 = vsyncpa [#allocation5], 0
    // Predicated region
    $region2: #{tpu_custom_call.1} parent=1 // pred_check
      _
    $region3: #{tpu_custom_call.1} parent=1 // pred_check_branch
      %15 = sbr.rel (0) target = $region5
    $region4: #{tpu_custom_call.1} parent=1 // pred_region
      %s17 = ssub.s32 2304, 2304
      %18 = vsyncadd [#allocation4], %s17
      %s19 = sshll.u32 [#allocation3], 4
      %s20 = int_to_ptr.vmem [resolvable:$true] %s19
      %25 = dma.hbm_to_vmem [thread:$0]  %s0, 2304, %s20, [#allocation4], 256, 256, 16
    $region5: #{tpu_custom_call.1} parent=1 // pred_fallthru
      _
    // Predicated region
    $region6: #{tpu_custom_call.1} parent=1 // pred_check
      _
    $region7: #{tpu_custom_call.1} parent=1 // pred_check_branch
      %27 = sbr.rel (0) target = $region9
    $region8: #{tpu_custom_call.1} parent=1 // pred_region
      %s29 = ssub.s32 128, 128
      %30 = vsyncadd [#allocation7], %s29
      %s32 = sshll.u32 [#allocation6], 4
      %s33 = int_to_ptr.vmem [resolvable:$true] %s32
      %35 = dma.hbm_to_vmem [thread:$0]  %s1, 128, %s33, [#allocation7]
    $region9: #{tpu_custom_call.1} parent=1 // pred_fallthru
      _
    // Predicated region
    $region10: #{tpu_custom_call.1} parent=1 // pred_check
      _
    $region11: #{tpu_custom_call.1} parent=1 // pred_check_branch
      %37 = sbr.rel (0) target = $region13
    $region12: #{tpu_custom_call.1} parent=1 // pred_region
      %s39 = ssub.s32 2048, 2048
      %40 = vsyncadd [#allocation7], %s39
      %s41 = sshll.u32 [#allocation8], 4
      %s42 = int_to_ptr.vmem [resolvable:$true] %s41
      %47 = dma.hbm_to_vmem [thread:$0]  %s2, 2048, %s42, [#allocation7], 256, 256, 16
    $region13: #{tpu_custom_call.1} parent=1 // pred_fallthru
      _
    // Predicated region
    $region14: #{tpu_custom_call.1} parent=1 // pred_check
      _
    $region15: #{tpu_custom_call.1} parent=1 // pred_check_branch
      %49 = sbr.rel (0) target = $region17
    $region16: #{tpu_custom_call.1} parent=1 // pred_region
      %s51 = ssub.s32 512, 512
      %52 = vsyncadd [#allocation10], %s51
      %s53 = sshll.u32 [#allocation9], 4
      %s54 = int_to_ptr.vmem [resolvable:$true] %s53
      %59 = dma.hbm_to_vmem [thread:$0]  %s3, 512, %s54, [#allocation10], 128, 128, 8
    $region17: #{tpu_custom_call.1} parent=1 // pred_fallthru
      _
    // Predicated region
    $region18: #{tpu_custom_call.1} parent=1 // pred_check
      _
    $region19: #{tpu_custom_call.1} parent=1 // pred_check_branch
      %61 = sbr.rel (0) target = $region21
    $region20: #{tpu_custom_call.1} parent=1 // pred_region
      _
    $region21: #{tpu_custom_call.1} parent=1 // pred_fallthru
      _
    // Predicated region
    $region22: #{tpu_custom_call.1} parent=1 // pred_check
      _
    $region23: #{tpu_custom_call.1} parent=1 // pred_check_branch
      %63 = sbr.rel (0) target = $region25
    $region24: #{tpu_custom_call.1} parent=1 // pred_region
      %64 = dma.done [#allocation4], 2304
    $region25: #{tpu_custom_call.1} parent=1 // pred_fallthru
      _
    // Predicated region
    $region26: #{tpu_custom_call.1} parent=1 // pred_check
      _
    $region27: #{tpu_custom_call.1} parent=1 // pred_check_branch
      %66 = sbr.rel (0) target = $region29
    $region28: #{tpu_custom_call.1} parent=1 // pred_region
      %67 = dma.done [#allocation7], 128
    $region29: #{tpu_custom_call.1} parent=1 // pred_fallthru
      _
    // Predicated region
    $region30: #{tpu_custom_call.1} parent=1 // pred_check
      _
    $region31: #{tpu_custom_call.1} parent=1 // pred_check_branch
      %69 = sbr.rel (0) target = $region33
    $region32: #{tpu_custom_call.1} parent=1 // pred_region
      %70 = dma.done [#allocation7], 2048
    $region33: #{tpu_custom_call.1} parent=1 // pred_fallthru
      _
    // Predicated region
    $region34: #{tpu_custom_call.1} parent=1 // pred_check
      _
    $region35: #{tpu_custom_call.1} parent=1 // pred_check_branch
      %72 = sbr.rel (0) target = $region37
    $region36: #{tpu_custom_call.1} parent=1 // pred_region
      %73 = dma.done [#allocation10], 512
    $region37: #{tpu_custom_call.1} parent=1 // pred_fallthru
      _
    %v74 = vld [vmem:[#allocation8] sm:$0xff]
    %v75 = vld [vmem:[#allocation8 + $0x8] sm:$0xff]
    %v76 = vld [vmem:[#allocation8 + $0x10] sm:$0xff]
    %v77 = vld [vmem:[#allocation8 + $0x18] sm:$0xff]
    %v78 = vld [vmem:[#allocation8 + $0x20] sm:$0xff]
    %v79 = vld [vmem:[#allocation8 + $0x28] sm:$0xff]
    %v80 = vld [vmem:[#allocation8 + $0x30] sm:$0xff]
    %v81 = vld [vmem:[#allocation8 + $0x38] sm:$0xff]
    %v82 = vld [vmem:[#allocation8 + $0x40] sm:$0xff]
    %v83 = vld [vmem:[#allocation8 + $0x48] sm:$0xff]
    %v84 = vld [vmem:[#allocation8 + $0x50] sm:$0xff]
    %v85 = vld [vmem:[#allocation8 + $0x58] sm:$0xff]
    %v86 = vld [vmem:[#allocation8 + $0x60] sm:$0xff]
    %v87 = vld [vmem:[#allocation8 + $0x68] sm:$0xff]
    %v88 = vld [vmem:[#allocation8 + $0x70] sm:$0xff]
    %v89 = vld [vmem:[#allocation8 + $0x78] sm:$0xff]
    %v90 = vld [vmem:[#allocation6] sm:$0xff]
    %v91 = vlaneseq
    %v92 = vand.u32 %v91, 127
    %vm93 = vcmp.lt.s32.totalorder %v92, 32
    %v94 = vld [vmem:[#allocation3] sm:$0xff]
    %v95 = vld [vmem:[#allocation3 + $0x8] sm:$0xff]
    %vm96 = vcmask 523264
    %v98 = vsel %vm96, %v90, 0
    %100 = vmatprep.subr.mxu0 0.0
    %101 = vmatpush1.msra.mxu0 0.0
    %102 = vmatprep.subr.mxu0 0.0
    %103 = vmatpush1.msra.mxu0 0.0
    %104 = vmatprep.subr.mxu0 0.0
    %105 = vmatpush1.msra.mxu0 0.0
    %106 = vmatprep.subr.mxu0 0.0
    %107 = vmatpush1.msra.mxu0 0.0
    %108 = vmatprep.subr.mxu0 0.0
    %109 = vmatpush1.msra.mxu0 0.0
    %110 = vmatprep.subr.mxu0 0.0
    %111 = vmatpush1.msra.mxu0 0.0
    %112 = vmatprep.subr.mxu0 0.0
    %113 = vmatpush1.msra.mxu0 0.0
    %114 = vmatprep.subr.mxu0 0.0
    %115 = vmatpush1.msra.mxu0 0.0
    %116 = vmatprep.subr.mxu0 %v89
    %117 = vmatpush1.msra.mxu0 %v88
    %118 = vmatprep.subr.mxu0 %v87
    %119 = vmatpush1.msra.mxu0 %v86
    %120 = vmatprep.subr.mxu0 %v85
    %121 = vmatpush1.msra.mxu0 %v84
    %122 = vmatprep.subr.mxu0 %v83
    %123 = vmatpush1.msra.mxu0 %v82
    %124 = vmatprep.subr.mxu0 %v81
    %125 = vmatpush1.msra.mxu0 %v80
    %126 = vmatprep.subr.mxu0 %v79
    %127 = vmatpush1.msra.mxu0 %v78
    %128 = vmatprep.subr.mxu0 %v77
    %129 = vmatpush1.msra.mxu0 %v76
    %130 = vmatprep.subr.mxu0 %v75
    %131 = vmatpush1.msra.mxu0 %v74
    %132 = vmatprep.subr.mxu0 0.0
    %133 = vmatpush2.msra.mxu0 0.0
    %134 = vmatprep.subr.mxu0 0.0
    %135 = vmatpush2.msra.mxu0 0.0
    %136 = vmatprep.subr.mxu0 0.0
    %137 = vmatpush2.msra.mxu0 0.0
    %138 = vmatprep.subr.mxu0 0.0
    %139 = vmatpush2.msra.mxu0 0.0
    %140 = vmatprep.subr.mxu0 0.0
    %141 = vmatpush2.msra.mxu0 0.0
    %142 = vmatprep.subr.mxu0 0.0
    %143 = vmatpush2.msra.mxu0 0.0
    %144 = vmatprep.subr.mxu0 0.0
    %145 = vmatpush2.msra.mxu0 0.0
    %146 = vmatprep.subr.mxu0 0.0
    %147 = vmatpush2.msra.mxu0 0.0
    %148 = vmatprep.subr.mxu0 0.0
    %149 = vmatpush2.msra.mxu0 0.0
    %150 = vmatprep.subr.mxu0 0.0
    %151 = vmatpush2.msra.mxu0 0.0
    %152 = vmatprep.subr.mxu0 0.0
    %153 = vmatpush2.msra.mxu0 0.0
    %154 = vmatprep.subr.mxu0 0.0
    %155 = vmatpush2.msra.mxu0 0.0
    %156 = vmatprep.subr.mxu0 0.0
    %157 = vmatpush2.msra.mxu0 0.0
    %158 = vmatprep.subr.mxu0 0.0
    %159 = vmatpush2.msra.mxu0 0.0
    %160 = vmatprep.subr.mxu0 0.0
    %161 = vmatpush2.msra.mxu0 0.0
    %162 = vmatprep.subr.mxu0 0.0
    %163 = vmatpush2.msra.mxu0 0.0
    %164 = vmatprep.mubr.f32.mxu0 0.0
    %165 = vmatmul.mubr.f32.gmra.mxu0 %v98
    %v166 = vpop.f32.mrf.mxu0
    %v167 = vadd.f32 %v94, %v166
    %v168 = vpop.f32.mrf.mxu0
    %v169 = vadd.f32 %v95, %v168
    %170 = vdwg.mxu0
    %v171 = vxor.u32 %v167, 2147483648
    %v172 = vxor.u32 %v169, 2147483648
    %v173 = vmul.f32 %v171, 1.442695
    %v174 = vpow.pop %v173
    %v175 = vmul.f32 %v172, 1.442695
    %v176 = vpow.pop %v175
    %v177 = vadd.f32 %v174, 1.0
    %v178 = vadd.f32 %v176, 1.0
    %v179 = vrcp.pop %v177
    %v180 = vmul.f32 1.0, %v179
    %v181 = vrcp.pop %v178
    %v182 = vmul.f32 1.0, %v181
    %v183 = vmul.f32 %v182, 2.0
    %v184 = vsub.f32 %v183, 1.0
    %v185 = vmul.f32 %v180, %v90
    %v186 = vmul.f32 %v180, %v184
    %188 = vrot.lane.b32.xlu0 %v186, 64
    %v189 = vpop.permute.xlu0 %188
    %v191 = vadd.f32 %v185, %v189
    %v192 = vtanh.pop %v191
    %v193 = vmul.f32 %v182, %v192
    %195 = vrot.lane.b32.xlu0 %v191, 64
    %v196 = vpop.permute.xlu0 %195
    %198 = vrot.lane.b32.xlu0 %v90, 64
    %v199 = vpop.permute.xlu0 %198
    %v201 = vsel %vm93, %v196, %v199
    %203 = vrot.lane.b32.xlu0 %v193, 64
    %v204 = vpop.permute.xlu0 %203
    %v206 = vsel %vm93, %v204, %v90
    %v207 = vld [vmem:[#allocation3 + $0x10] sm:$0xff]
    %v208 = vld [vmem:[#allocation3 + $0x18] sm:$0xff]
    %v210 = vsel %vm96, %v206, 0
    %212 = vmatprep.subr.mxu0 0.0
    %213 = vmatpush1.msra.mxu0 0.0
    %214 = vmatprep.subr.mxu0 0.0
    %215 = vmatpush1.msra.mxu0 0.0
    %216 = vmatprep.subr.mxu0 0.0
    %217 = vmatpush1.msra.mxu0 0.0
    %218 = vmatprep.subr.mxu0 0.0
    %219 = vmatpush1.msra.mxu0 0.0
    %220 = vmatprep.subr.mxu0 0.0
    %221 = vmatpush1.msra.mxu0 0.0
    %222 = vmatprep.subr.mxu0 0.0
    %223 = vmatpush1.msra.mxu0 0.0
    %224 = vmatprep.subr.mxu0 0.0
    %225 = vmatpush1.msra.mxu0 0.0
    %226 = vmatprep.subr.mxu0 0.0
    %227 = vmatpush1.msra.mxu0 0.0
    %228 = vmatprep.subr.mxu0 %v89
    %229 = vmatpush1.msra.mxu0 %v88
    %230 = vmatprep.subr.mxu0 %v87
    %231 = vmatpush1.msra.mxu0 %v86
    %232 = vmatprep.subr.mxu0 %v85
    %233 = vmatpush1.msra.mxu0 %v84
    %234 = vmatprep.subr.mxu0 %v83
    %235 = vmatpush1.msra.mxu0 %v82
    %236 = vmatprep.subr.mxu0 %v81
    %237 = vmatpush1.msra.mxu0 %v80
    %238 = vmatprep.subr.mxu0 %v79
    %239 = vmatpush1.msra.mxu0 %v78
    %240 = vmatprep.subr.mxu0 %v77
    %241 = vmatpush1.msra.mxu0 %v76
    %242 = vmatprep.subr.mxu0 %v75
    %243 = vmatpush1.msra.mxu0 %v74
    %244 = vmatprep.subr.mxu0 0.0
    %245 = vmatpush2.msra.mxu0 0.0
    %246 = vmatprep.subr.mxu0 0.0
    %247 = vmatpush2.msra.mxu0 0.0
    %248 = vmatprep.subr.mxu0 0.0
    %249 = vmatpush2.msra.mxu0 0.0
    %250 = vmatprep.subr.mxu0 0.0
    %251 = vmatpush2.msra.mxu0 0.0
    %252 = vmatprep.subr.mxu0 0.0
    %253 = vmatpush2.msra.mxu0 0.0
    %254 = vmatprep.subr.mxu0 0.0
    %255 = vmatpush2.msra.mxu0 0.0
    %256 = vmatprep.subr.mxu0 0.0
    %257 = vmatpush2.msra.mxu0 0.0
    %258 = vmatprep.subr.mxu0 0.0
    %259 = vmatpush2.msra.mxu0 0.0
    %260 = vmatprep.subr.mxu0 0.0
    %261 = vmatpush2.msra.mxu0 0.0
    %262 = vmatprep.subr.mxu0 0.0
    %263 = vmatpush2.msra.mxu0 0.0
    %264 = vmatprep.subr.mxu0 0.0
    %265 = vmatpush2.msra.mxu0 0.0
    %266 = vmatprep.subr.mxu0 0.0
    %267 = vmatpush2.msra.mxu0 0.0
    %268 = vmatprep.subr.mxu0 0.0
    %269 = vmatpush2.msra.mxu0 0.0
    %270 = vmatprep.subr.mxu0 0.0
    %271 = vmatpush2.msra.mxu0 0.0
    %272 = vmatprep.subr.mxu0 0.0
    %273 = vmatpush2.msra.mxu0 0.0
    %274 = vmatprep.subr.mxu0 0.0
    %275 = vmatpush2.msra.mxu0 0.0
    %276 = vmatprep.mubr.f32.mxu0 0.0
    %277 = vmatmul.mubr.f32.gmra.mxu0 %v210
    %v278 = vpop.f32.mrf.mxu0
    %v279 = vadd.f32 %v207, %v278
    %v280 = vpop.f32.mrf.mxu0
    %v281 = vadd.f32 %v208, %v280
    %282 = vdwg.mxu0
    %v283 = vxor.u32 %v279, 2147483648
    %v284 = vxor.u32 %v281, 2147483648
    %v285 = vmul.f32 %v283, 1.442695
    %v286 = vpow.pop %v285
    %v287 = vmul.f32 %v284, 1.442695
    %v288 = vpow.pop %v287
    %v289 = vadd.f32 %v286, 1.0
    %v290 = vadd.f32 %v288, 1.0
    %v291 = vrcp.pop %v289
    %v292 = vmul.f32 1.0, %v291
    %v293 = vrcp.pop %v290
    %v294 = vmul.f32 1.0, %v293
    %v295 = vmul.f32 %v294, 2.0
    %v296 = vsub.f32 %v295, 1.0
    %298 = vrot.lane.b32.xlu0 %v201, 64
    %v299 = vpop.permute.xlu0 %298
    %v301 = vmul.f32 %v292, %v299
    %v302 = vmul.f32 %v292, %v296
    %304 = vrot.lane.b32.xlu0 %v302, 64
    %v305 = vpop.permute.xlu0 %304
    %v307 = vadd.f32 %v301, %v305
    %v308 = vtanh.pop %v307
    %v309 = vmul.f32 %v294, %v308
    %311 = vrot.lane.b32.xlu0 %v309, 32
    %v312 = vpop.permute.xlu0 %311
    %vm314 = vcmask 261120
    %315 = vst.msk [vmem:[#allocation2] sm:$0xff] %vm314, %v312
    %v316 = vld [vmem:[#allocation3 + $0x20] sm:$0xff]
    %v317 = vld [vmem:[#allocation3 + $0x28] sm:$0xff]
    %318 = vrot.lane.b32.xlu0 %v309, 64
    %v319 = vpop.permute.xlu0 %318
    %v320 = vsel %vm96, %v319, 0
    %322 = vmatprep.subr.mxu0 0.0
    %323 = vmatpush1.msra.mxu0 0.0
    %324 = vmatprep.subr.mxu0 0.0
    %325 = vmatpush1.msra.mxu0 0.0
    %326 = vmatprep.subr.mxu0 0.0
    %327 = vmatpush1.msra.mxu0 0.0
    %328 = vmatprep.subr.mxu0 0.0
    %329 = vmatpush1.msra.mxu0 0.0
    %330 = vmatprep.subr.mxu0 0.0
    %331 = vmatpush1.msra.mxu0 0.0
    %332 = vmatprep.subr.mxu0 0.0
    %333 = vmatpush1.msra.mxu0 0.0
    %334 = vmatprep.subr.mxu0 0.0
    %335 = vmatpush1.msra.mxu0 0.0
    %336 = vmatprep.subr.mxu0 0.0
    %337 = vmatpush1.msra.mxu0 0.0
    %338 = vmatprep.subr.mxu0 %v89
    %339 = vmatpush1.msra.mxu0 %v88
    %340 = vmatprep.subr.mxu0 %v87
    %341 = vmatpush1.msra.mxu0 %v86
    %342 = vmatprep.subr.mxu0 %v85
    %343 = vmatpush1.msra.mxu0 %v84
    %344 = vmatprep.subr.mxu0 %v83
    %345 = vmatpush1.msra.mxu0 %v82
    %346 = vmatprep.subr.mxu0 %v81
    %347 = vmatpush1.msra.mxu0 %v80
    %348 = vmatprep.subr.mxu0 %v79
    %349 = vmatpush1.msra.mxu0 %v78
    %350 = vmatprep.subr.mxu0 %v77
    %351 = vmatpush1.msra.mxu0 %v76
    %352 = vmatprep.subr.mxu0 %v75
    %353 = vmatpush1.msra.mxu0 %v74
    %354 = vmatprep.subr.mxu0 0.0
    %355 = vmatpush2.msra.mxu0 0.0
    %356 = vmatprep.subr.mxu0 0.0
    %357 = vmatpush2.msra.mxu0 0.0
    %358 = vmatprep.subr.mxu0 0.0
    %359 = vmatpush2.msra.mxu0 0.0
    %360 = vmatprep.subr.mxu0 0.0
    %361 = vmatpush2.msra.mxu0 0.0
    %362 = vmatprep.subr.mxu0 0.0
    %363 = vmatpush2.msra.mxu0 0.0
    %364 = vmatprep.subr.mxu0 0.0
    %365 = vmatpush2.msra.mxu0 0.0
    %366 = vmatprep.subr.mxu0 0.0
    %367 = vmatpush2.msra.mxu0 0.0
    %368 = vmatprep.subr.mxu0 0.0
    %369 = vmatpush2.msra.mxu0 0.0
    %370 = vmatprep.subr.mxu0 0.0
    %371 = vmatpush2.msra.mxu0 0.0
    %372 = vmatprep.subr.mxu0 0.0
    %373 = vmatpush2.msra.mxu0 0.0
    %374 = vmatprep.subr.mxu0 0.0
    %375 = vmatpush2.msra.mxu0 0.0
    %376 = vmatprep.subr.mxu0 0.0
    %377 = vmatpush2.msra.mxu0 0.0
    %378 = vmatprep.subr.mxu0 0.0
    %379 = vmatpush2.msra.mxu0 0.0
    %380 = vmatprep.subr.mxu0 0.0
    %381 = vmatpush2.msra.mxu0 0.0
    %382 = vmatprep.subr.mxu0 0.0
    %383 = vmatpush2.msra.mxu0 0.0
    %384 = vmatprep.subr.mxu0 0.0
    %385 = vmatpush2.msra.mxu0 0.0
    %386 = vmatprep.mubr.f32.mxu0 0.0
    %387 = vmatmul.mubr.f32.gmra.mxu0 %v320
    %v388 = vpop.f32.mrf.mxu0
    %v389 = vadd.f32 %v316, %v388
    %v390 = vpop.f32.mrf.mxu0
    %v391 = vadd.f32 %v317, %v390
    %392 = vdwg.mxu0
    %v393 = vxor.u32 %v389, 2147483648
    %v394 = vxor.u32 %v391, 2147483648
    %v395 = vmul.f32 %v393, 1.442695
    %v396 = vpow.pop %v395
    %v397 = vmul.f32 %v394, 1.442695
    %v398 = vpow.pop %v397
    %v399 = vadd.f32 %v396, 1.0
    %v400 = vadd.f32 %v398, 1.0
    %v401 = vrcp.pop %v399
    %v402 = vmul.f32 1.0, %v401
    %v403 = vrcp.pop %v400
    %v404 = vmul.f32 1.0, %v403
    %v405 = vmul.f32 %v404, 2.0
    %v406 = vsub.f32 %v405, 1.0
    %v407 = vmul.f32 %v402, %v307
    %v408 = vmul.f32 %v402, %v406
    %410 = vrot.lane.b32.xlu0 %v408, 64
    %v411 = vpop.permute.xlu0 %410
    %v413 = vadd.f32 %v407, %v411
    %v414 = vtanh.pop %v413
    %v415 = vmul.f32 %v404, %v414
    %417 = vrot.lane.b32.xlu0 %v415, 32
    %v418 = vpop.permute.xlu0 %417
    %420 = vst.msk [vmem:[#allocation2 + $0x8] sm:$0xff] %vm314, %v418
    %v421 = vld [vmem:[#allocation3 + $0x30] sm:$0xff]
    %v422 = vld [vmem:[#allocation3 + $0x38] sm:$0xff]
    %423 = vrot.lane.b32.xlu0 %v415, 64
    %v424 = vpop.permute.xlu0 %423
    %v425 = vsel %vm96, %v424, 0
    %427 = vmatprep.subr.mxu0 0.0
    %428 = vmatpush1.msra.mxu0 0.0
    %429 = vmatprep.subr.mxu0 0.0
    %430 = vmatpush1.msra.mxu0 0.0
    %431 = vmatprep.subr.mxu0 0.0
    %432 = vmatpush1.msra.mxu0 0.0
    %433 = vmatprep.subr.mxu0 0.0
    %434 = vmatpush1.msra.mxu0 0.0
    %435 = vmatprep.subr.mxu0 0.0
    %436 = vmatpush1.msra.mxu0 0.0
    %437 = vmatprep.subr.mxu0 0.0
    %438 = vmatpush1.msra.mxu0 0.0
    %439 = vmatprep.subr.mxu0 0.0
    %440 = vmatpush1.msra.mxu0 0.0
    %441 = vmatprep.subr.mxu0 0.0
    %442 = vmatpush1.msra.mxu0 0.0
    %443 = vmatprep.subr.mxu0 %v89
    %444 = vmatpush1.msra.mxu0 %v88
    %445 = vmatprep.subr.mxu0 %v87
    %446 = vmatpush1.msra.mxu0 %v86
    %447 = vmatprep.subr.mxu0 %v85
    %448 = vmatpush1.msra.mxu0 %v84
    %449 = vmatprep.subr.mxu0 %v83
    %450 = vmatpush1.msra.mxu0 %v82
    %451 = vmatprep.subr.mxu0 %v81
    %452 = vmatpush1.msra.mxu0 %v80
    %453 = vmatprep.subr.mxu0 %v79
    %454 = vmatpush1.msra.mxu0 %v78
    %455 = vmatprep.subr.mxu0 %v77
    %456 = vmatpush1.msra.mxu0 %v76
    %457 = vmatprep.subr.mxu0 %v75
    %458 = vmatpush1.msra.mxu0 %v74
    %459 = vmatprep.subr.mxu0 0.0
    %460 = vmatpush2.msra.mxu0 0.0
    %461 = vmatprep.subr.mxu0 0.0
    %462 = vmatpush2.msra.mxu0 0.0
    %463 = vmatprep.subr.mxu0 0.0
    %464 = vmatpush2.msra.mxu0 0.0
    %465 = vmatprep.subr.mxu0 0.0
    %466 = vmatpush2.msra.mxu0 0.0
    %467 = vmatprep.subr.mxu0 0.0
    %468 = vmatpush2.msra.mxu0 0.0
    %469 = vmatprep.subr.mxu0 0.0
    %470 = vmatpush2.msra.mxu0 0.0
    %471 = vmatprep.subr.mxu0 0.0
    %472 = vmatpush2.msra.mxu0 0.0
    %473 = vmatprep.subr.mxu0 0.0
    %474 = vmatpush2.msra.mxu0 0.0
    %475 = vmatprep.subr.mxu0 0.0
    %476 = vmatpush2.msra.mxu0 0.0
    %477 = vmatprep.subr.mxu0 0.0
    %478 = vmatpush2.msra.mxu0 0.0
    %479 = vmatprep.subr.mxu0 0.0
    %480 = vmatpush2.msra.mxu0 0.0
    %481 = vmatprep.subr.mxu0 0.0
    %482 = vmatpush2.msra.mxu0 0.0
    %483 = vmatprep.subr.mxu0 0.0
    %484 = vmatpush2.msra.mxu0 0.0
    %485 = vmatprep.subr.mxu0 0.0
    %486 = vmatpush2.msra.mxu0 0.0
    %487 = vmatprep.subr.mxu0 0.0
    %488 = vmatpush2.msra.mxu0 0.0
    %489 = vmatprep.subr.mxu0 0.0
    %490 = vmatpush2.msra.mxu0 0.0
    %491 = vmatprep.mubr.f32.mxu0 0.0
    %492 = vmatmul.mubr.f32.gmra.mxu0 %v425
    %v493 = vpop.f32.mrf.mxu0
    %v494 = vadd.f32 %v421, %v493
    %v495 = vpop.f32.mrf.mxu0
    %v496 = vadd.f32 %v422, %v495
    %497 = vdwg.mxu0
    %v498 = vxor.u32 %v494, 2147483648
    %v499 = vxor.u32 %v496, 2147483648
    %v500 = vmul.f32 %v498, 1.442695
    %v501 = vpow.pop %v500
    %v502 = vmul.f32 %v499, 1.442695
    %v503 = vpow.pop %v502
    %v504 = vadd.f32 %v501, 1.0
    %v505 = vadd.f32 %v503, 1.0
    %v506 = vrcp.pop %v504
    %v507 = vmul.f32 1.0, %v506
    %v508 = vrcp.pop %v505
    %v509 = vmul.f32 1.0, %v508
    %v510 = vmul.f32 %v509, 2.0
    %v511 = vsub.f32 %v510, 1.0
    %v512 = vmul.f32 %v507, %v413
    %v513 = vmul.f32 %v507, %v511
    %515 = vrot.lane.b32.xlu0 %v513, 64
    %v516 = vpop.permute.xlu0 %515
    %v518 = vadd.f32 %v512, %v516
    %v519 = vtanh.pop %v518
    %v520 = vmul.f32 %v509, %v519
    %522 = vrot.lane.b32.xlu0 %v520, 32
    %v523 = vpop.permute.xlu0 %522
    %525 = vst.msk [vmem:[#allocation2 + $0x10] sm:$0xff] %vm314, %v523
    %v526 = vld [vmem:[#allocation3 + $0x40] sm:$0xff]
    %v527 = vld [vmem:[#allocation3 + $0x48] sm:$0xff]
    %528 = vrot.lane.b32.xlu0 %v520, 64
    %v529 = vpop.permute.xlu0 %528
    %v530 = vsel %vm96, %v529, 0
    %532 = vmatprep.subr.mxu0 0.0
    %533 = vmatpush1.msra.mxu0 0.0
    %534 = vmatprep.subr.mxu0 0.0
    %535 = vmatpush1.msra.mxu0 0.0
    %536 = vmatprep.subr.mxu0 0.0
    %537 = vmatpush1.msra.mxu0 0.0
    %538 = vmatprep.subr.mxu0 0.0
    %539 = vmatpush1.msra.mxu0 0.0
    %540 = vmatprep.subr.mxu0 0.0
    %541 = vmatpush1.msra.mxu0 0.0
    %542 = vmatprep.subr.mxu0 0.0
    %543 = vmatpush1.msra.mxu0 0.0
    %544 = vmatprep.subr.mxu0 0.0
    %545 = vmatpush1.msra.mxu0 0.0
    %546 = vmatprep.subr.mxu0 0.0
    %547 = vmatpush1.msra.mxu0 0.0
    %548 = vmatprep.subr.mxu0 %v89
    %549 = vmatpush1.msra.mxu0 %v88
    %550 = vmatprep.subr.mxu0 %v87
    %551 = vmatpush1.msra.mxu0 %v86
    %552 = vmatprep.subr.mxu0 %v85
    %553 = vmatpush1.msra.mxu0 %v84
    %554 = vmatprep.subr.mxu0 %v83
    %555 = vmatpush1.msra.mxu0 %v82
    %556 = vmatprep.subr.mxu0 %v81
    %557 = vmatpush1.msra.mxu0 %v80
    %558 = vmatprep.subr.mxu0 %v79
    %559 = vmatpush1.msra.mxu0 %v78
    %560 = vmatprep.subr.mxu0 %v77
    %561 = vmatpush1.msra.mxu0 %v76
    %562 = vmatprep.subr.mxu0 %v75
    %563 = vmatpush1.msra.mxu0 %v74
    %564 = vmatprep.subr.mxu0 0.0
    %565 = vmatpush2.msra.mxu0 0.0
    %566 = vmatprep.subr.mxu0 0.0
    %567 = vmatpush2.msra.mxu0 0.0
    %568 = vmatprep.subr.mxu0 0.0
    %569 = vmatpush2.msra.mxu0 0.0
    %570 = vmatprep.subr.mxu0 0.0
    %571 = vmatpush2.msra.mxu0 0.0
    %572 = vmatprep.subr.mxu0 0.0
    %573 = vmatpush2.msra.mxu0 0.0
    %574 = vmatprep.subr.mxu0 0.0
    %575 = vmatpush2.msra.mxu0 0.0
    %576 = vmatprep.subr.mxu0 0.0
    %577 = vmatpush2.msra.mxu0 0.0
    %578 = vmatprep.subr.mxu0 0.0
    %579 = vmatpush2.msra.mxu0 0.0
    %580 = vmatprep.subr.mxu0 0.0
    %581 = vmatpush2.msra.mxu0 0.0
    %582 = vmatprep.subr.mxu0 0.0
    %583 = vmatpush2.msra.mxu0 0.0
    %584 = vmatprep.subr.mxu0 0.0
    %585 = vmatpush2.msra.mxu0 0.0
    %586 = vmatprep.subr.mxu0 0.0
    %587 = vmatpush2.msra.mxu0 0.0
    %588 = vmatprep.subr.mxu0 0.0
    %589 = vmatpush2.msra.mxu0 0.0
    %590 = vmatprep.subr.mxu0 0.0
    %591 = vmatpush2.msra.mxu0 0.0
    %592 = vmatprep.subr.mxu0 0.0
    %593 = vmatpush2.msra.mxu0 0.0
    %594 = vmatprep.subr.mxu0 0.0
    %595 = vmatpush2.msra.mxu0 0.0
    %596 = vmatprep.mubr.f32.mxu0 0.0
    %597 = vmatmul.mubr.f32.gmra.mxu0 %v530
    %v598 = vpop.f32.mrf.mxu0
    %v599 = vadd.f32 %v526, %v598
    %v600 = vpop.f32.mrf.mxu0
    %v601 = vadd.f32 %v527, %v600
    %602 = vdwg.mxu0
    %v603 = vxor.u32 %v599, 2147483648
    %v604 = vxor.u32 %v601, 2147483648
    %v605 = vmul.f32 %v603, 1.442695
    %v606 = vpow.pop %v605
    %v607 = vmul.f32 %v604, 1.442695
    %v608 = vpow.pop %v607
    %v609 = vadd.f32 %v606, 1.0
    %v610 = vadd.f32 %v608, 1.0
    %v611 = vrcp.pop %v609
    %v612 = vmul.f32 1.0, %v611
    %v613 = vrcp.pop %v610
    %v614 = vmul.f32 1.0, %v613
    %v615 = vmul.f32 %v614, 2.0
    %v616 = vsub.f32 %v615, 1.0
    %v617 = vmul.f32 %v612, %v518
    %v618 = vmul.f32 %v612, %v616
    %620 = vrot.lane.b32.xlu0 %v618, 64
    %v621 = vpop.permute.xlu0 %620
    %v623 = vadd.f32 %v617, %v621
    %v624 = vtanh.pop %v623
    %v625 = vmul.f32 %v614, %v624
    %627 = vrot.lane.b32.xlu0 %v625, 32
    %v628 = vpop.permute.xlu0 %627
    %630 = vst.msk [vmem:[#allocation2 + $0x18] sm:$0xff] %vm314, %v628
    %v631 = vld [vmem:[#allocation3 + $0x50] sm:$0xff]
    %v632 = vld [vmem:[#allocation3 + $0x58] sm:$0xff]
    %633 = vrot.lane.b32.xlu0 %v625, 64
    %v634 = vpop.permute.xlu0 %633
    %v635 = vsel %vm96, %v634, 0
    %637 = vmatprep.subr.mxu0 0.0
    %638 = vmatpush1.msra.mxu0 0.0
    %639 = vmatprep.subr.mxu0 0.0
    %640 = vmatpush1.msra.mxu0 0.0
    %641 = vmatprep.subr.mxu0 0.0
    %642 = vmatpush1.msra.mxu0 0.0
    %643 = vmatprep.subr.mxu0 0.0
    %644 = vmatpush1.msra.mxu0 0.0
    %645 = vmatprep.subr.mxu0 0.0
    %646 = vmatpush1.msra.mxu0 0.0
    %647 = vmatprep.subr.mxu0 0.0
    %648 = vmatpush1.msra.mxu0 0.0
    %649 = vmatprep.subr.mxu0 0.0
    %650 = vmatpush1.msra.mxu0 0.0
    %651 = vmatprep.subr.mxu0 0.0
    %652 = vmatpush1.msra.mxu0 0.0
    %653 = vmatprep.subr.mxu0 %v89
    %654 = vmatpush1.msra.mxu0 %v88
    %655 = vmatprep.subr.mxu0 %v87
    %656 = vmatpush1.msra.mxu0 %v86
    %657 = vmatprep.subr.mxu0 %v85
    %658 = vmatpush1.msra.mxu0 %v84
    %659 = vmatprep.subr.mxu0 %v83
    %660 = vmatpush1.msra.mxu0 %v82
    %661 = vmatprep.subr.mxu0 %v81
    %662 = vmatpush1.msra.mxu0 %v80
    %663 = vmatprep.subr.mxu0 %v79
    %664 = vmatpush1.msra.mxu0 %v78
    %665 = vmatprep.subr.mxu0 %v77
    %666 = vmatpush1.msra.mxu0 %v76
    %667 = vmatprep.subr.mxu0 %v75
    %668 = vmatpush1.msra.mxu0 %v74
    %669 = vmatprep.subr.mxu0 0.0
    %670 = vmatpush2.msra.mxu0 0.0
    %671 = vmatprep.subr.mxu0 0.0
    %672 = vmatpush2.msra.mxu0 0.0
    %673 = vmatprep.subr.mxu0 0.0
    %674 = vmatpush2.msra.mxu0 0.0
    %675 = vmatprep.subr.mxu0 0.0
    %676 = vmatpush2.msra.mxu0 0.0
    %677 = vmatprep.subr.mxu0 0.0
    %678 = vmatpush2.msra.mxu0 0.0
    %679 = vmatprep.subr.mxu0 0.0
    %680 = vmatpush2.msra.mxu0 0.0
    %681 = vmatprep.subr.mxu0 0.0
    %682 = vmatpush2.msra.mxu0 0.0
    %683 = vmatprep.subr.mxu0 0.0
    %684 = vmatpush2.msra.mxu0 0.0
    %685 = vmatprep.subr.mxu0 0.0
    %686 = vmatpush2.msra.mxu0 0.0
    %687 = vmatprep.subr.mxu0 0.0
    %688 = vmatpush2.msra.mxu0 0.0
    %689 = vmatprep.subr.mxu0 0.0
    %690 = vmatpush2.msra.mxu0 0.0
    %691 = vmatprep.subr.mxu0 0.0
    %692 = vmatpush2.msra.mxu0 0.0
    %693 = vmatprep.subr.mxu0 0.0
    %694 = vmatpush2.msra.mxu0 0.0
    %695 = vmatprep.subr.mxu0 0.0
    %696 = vmatpush2.msra.mxu0 0.0
    %697 = vmatprep.subr.mxu0 0.0
    %698 = vmatpush2.msra.mxu0 0.0
    %699 = vmatprep.subr.mxu0 0.0
    %700 = vmatpush2.msra.mxu0 0.0
    %701 = vmatprep.mubr.f32.mxu0 0.0
    %702 = vmatmul.mubr.f32.gmra.mxu0 %v635
    %v703 = vpop.f32.mrf.mxu0
    %v704 = vadd.f32 %v631, %v703
    %v705 = vpop.f32.mrf.mxu0
    %v706 = vadd.f32 %v632, %v705
    %707 = vdwg.mxu0
    %v708 = vxor.u32 %v704, 2147483648
    %v709 = vxor.u32 %v706, 2147483648
    %v710 = vmul.f32 %v708, 1.442695
    %v711 = vpow.pop %v710
    %v712 = vmul.f32 %v709, 1.442695
    %v713 = vpow.pop %v712
    %v714 = vadd.f32 %v711, 1.0
    %v715 = vadd.f32 %v713, 1.0
    %v716 = vrcp.pop %v714
    %v717 = vmul.f32 1.0, %v716
    %v718 = vrcp.pop %v715
    %v719 = vmul.f32 1.0, %v718
    %v720 = vmul.f32 %v719, 2.0
    %v721 = vsub.f32 %v720, 1.0
    %v722 = vmul.f32 %v717, %v623
    %v723 = vmul.f32 %v717, %v721
    %725 = vrot.lane.b32.xlu0 %v723, 64
    %v726 = vpop.permute.xlu0 %725
    %v728 = vadd.f32 %v722, %v726
    %v729 = vtanh.pop %v728
    %v730 = vmul.f32 %v719, %v729
    %732 = vrot.lane.b32.xlu0 %v730, 32
    %v733 = vpop.permute.xlu0 %732
    %735 = vst.msk [vmem:[#allocation2 + $0x20] sm:$0xff] %vm314, %v733
    %v736 = vld [vmem:[#allocation3 + $0x60] sm:$0xff]
    %v737 = vld [vmem:[#allocation3 + $0x68] sm:$0xff]
    %738 = vrot.lane.b32.xlu0 %v730, 64
    %v739 = vpop.permute.xlu0 %738
    %v740 = vsel %vm96, %v739, 0
    %742 = vmatprep.subr.mxu0 0.0
    %743 = vmatpush1.msra.mxu0 0.0
    %744 = vmatprep.subr.mxu0 0.0
    %745 = vmatpush1.msra.mxu0 0.0
    %746 = vmatprep.subr.mxu0 0.0
    %747 = vmatpush1.msra.mxu0 0.0
    %748 = vmatprep.subr.mxu0 0.0
    %749 = vmatpush1.msra.mxu0 0.0
    %750 = vmatprep.subr.mxu0 0.0
    %751 = vmatpush1.msra.mxu0 0.0
    %752 = vmatprep.subr.mxu0 0.0
    %753 = vmatpush1.msra.mxu0 0.0
    %754 = vmatprep.subr.mxu0 0.0
    %755 = vmatpush1.msra.mxu0 0.0
    %756 = vmatprep.subr.mxu0 0.0
    %757 = vmatpush1.msra.mxu0 0.0
    %758 = vmatprep.subr.mxu0 %v89
    %759 = vmatpush1.msra.mxu0 %v88
    %760 = vmatprep.subr.mxu0 %v87
    %761 = vmatpush1.msra.mxu0 %v86
    %762 = vmatprep.subr.mxu0 %v85
    %763 = vmatpush1.msra.mxu0 %v84
    %764 = vmatprep.subr.mxu0 %v83
    %765 = vmatpush1.msra.mxu0 %v82
    %766 = vmatprep.subr.mxu0 %v81
    %767 = vmatpush1.msra.mxu0 %v80
    %768 = vmatprep.subr.mxu0 %v79
    %769 = vmatpush1.msra.mxu0 %v78
    %770 = vmatprep.subr.mxu0 %v77
    %771 = vmatpush1.msra.mxu0 %v76
    %772 = vmatprep.subr.mxu0 %v75
    %773 = vmatpush1.msra.mxu0 %v74
    %774 = vmatprep.subr.mxu0 0.0
    %775 = vmatpush2.msra.mxu0 0.0
    %776 = vmatprep.subr.mxu0 0.0
    %777 = vmatpush2.msra.mxu0 0.0
    %778 = vmatprep.subr.mxu0 0.0
    %779 = vmatpush2.msra.mxu0 0.0
    %780 = vmatprep.subr.mxu0 0.0
    %781 = vmatpush2.msra.mxu0 0.0
    %782 = vmatprep.subr.mxu0 0.0
    %783 = vmatpush2.msra.mxu0 0.0
    %784 = vmatprep.subr.mxu0 0.0
    %785 = vmatpush2.msra.mxu0 0.0
    %786 = vmatprep.subr.mxu0 0.0
    %787 = vmatpush2.msra.mxu0 0.0
    %788 = vmatprep.subr.mxu0 0.0
    %789 = vmatpush2.msra.mxu0 0.0
    %790 = vmatprep.subr.mxu0 0.0
    %791 = vmatpush2.msra.mxu0 0.0
    %792 = vmatprep.subr.mxu0 0.0
    %793 = vmatpush2.msra.mxu0 0.0
    %794 = vmatprep.subr.mxu0 0.0
    %795 = vmatpush2.msra.mxu0 0.0
    %796 = vmatprep.subr.mxu0 0.0
    %797 = vmatpush2.msra.mxu0 0.0
    %798 = vmatprep.subr.mxu0 0.0
    %799 = vmatpush2.msra.mxu0 0.0
    %800 = vmatprep.subr.mxu0 0.0
    %801 = vmatpush2.msra.mxu0 0.0
    %802 = vmatprep.subr.mxu0 0.0
    %803 = vmatpush2.msra.mxu0 0.0
    %804 = vmatprep.subr.mxu0 0.0
    %805 = vmatpush2.msra.mxu0 0.0
    %806 = vmatprep.mubr.f32.mxu0 0.0
    %807 = vmatmul.mubr.f32.gmra.mxu0 %v740
    %v808 = vpop.f32.mrf.mxu0
    %v809 = vadd.f32 %v736, %v808
    %v810 = vpop.f32.mrf.mxu0
    %v811 = vadd.f32 %v737, %v810
    %812 = vdwg.mxu0
    %v813 = vxor.u32 %v809, 2147483648
    %v814 = vxor.u32 %v811, 2147483648
    %v815 = vmul.f32 %v813, 1.442695
    %v816 = vpow.pop %v815
    %v817 = vmul.f32 %v814, 1.442695
    %v818 = vpow.pop %v817
    %v819 = vadd.f32 %v816, 1.0
    %v820 = vadd.f32 %v818, 1.0
    %v821 = vrcp.pop %v819
    %v822 = vmul.f32 1.0, %v821
    %v823 = vrcp.pop %v820
    %v824 = vmul.f32 1.0, %v823
    %v825 = vmul.f32 %v824, 2.0
    %v826 = vsub.f32 %v825, 1.0
    %v827 = vmul.f32 %v822, %v728
    %v828 = vmul.f32 %v822, %v826
    %830 = vrot.lane.b32.xlu0 %v828, 64
    %v831 = vpop.permute.xlu0 %830
    %v833 = vadd.f32 %v827, %v831
    %v834 = vtanh.pop %v833
    %v835 = vmul.f32 %v824, %v834
    %837 = vrot.lane.b32.xlu0 %v835, 32
    %v838 = vpop.permute.xlu0 %837
    %840 = vst.msk [vmem:[#allocation2 + $0x28] sm:$0xff] %vm314, %v838
    %v841 = vld [vmem:[#allocation3 + $0x70] sm:$0xff]
    %v842 = vld [vmem:[#allocation3 + $0x78] sm:$0xff]
    %843 = vrot.lane.b32.xlu0 %v835, 64
    %v844 = vpop.permute.xlu0 %843
    %v845 = vsel %vm96, %v844, 0
    %847 = vmatprep.subr.mxu0 0.0
    %848 = vmatpush1.msra.mxu0 0.0
    %849 = vmatprep.subr.mxu0 0.0
    %850 = vmatpush1.msra.mxu0 0.0
    %851 = vmatprep.subr.mxu0 0.0
    %852 = vmatpush1.msra.mxu0 0.0
    %853 = vmatprep.subr.mxu0 0.0
    %854 = vmatpush1.msra.mxu0 0.0
    %855 = vmatprep.subr.mxu0 0.0
    %856 = vmatpush1.msra.mxu0 0.0
    %857 = vmatprep.subr.mxu0 0.0
    %858 = vmatpush1.msra.mxu0 0.0
    %859 = vmatprep.subr.mxu0 0.0
    %860 = vmatpush1.msra.mxu0 0.0
    %861 = vmatprep.subr.mxu0 0.0
    %862 = vmatpush1.msra.mxu0 0.0
    %863 = vmatprep.subr.mxu0 %v89
    %864 = vmatpush1.msra.mxu0 %v88
    %865 = vmatprep.subr.mxu0 %v87
    %866 = vmatpush1.msra.mxu0 %v86
    %867 = vmatprep.subr.mxu0 %v85
    %868 = vmatpush1.msra.mxu0 %v84
    %869 = vmatprep.subr.mxu0 %v83
    %870 = vmatpush1.msra.mxu0 %v82
    %871 = vmatprep.subr.mxu0 %v81
    %872 = vmatpush1.msra.mxu0 %v80
    %873 = vmatprep.subr.mxu0 %v79
    %874 = vmatpush1.msra.mxu0 %v78
    %875 = vmatprep.subr.mxu0 %v77
    %876 = vmatpush1.msra.mxu0 %v76
    %877 = vmatprep.subr.mxu0 %v75
    %878 = vmatpush1.msra.mxu0 %v74
    %879 = vmatprep.subr.mxu0 0.0
    %880 = vmatpush2.msra.mxu0 0.0
    %881 = vmatprep.subr.mxu0 0.0
    %882 = vmatpush2.msra.mxu0 0.0
    %883 = vmatprep.subr.mxu0 0.0
    %884 = vmatpush2.msra.mxu0 0.0
    %885 = vmatprep.subr.mxu0 0.0
    %886 = vmatpush2.msra.mxu0 0.0
    %887 = vmatprep.subr.mxu0 0.0
    %888 = vmatpush2.msra.mxu0 0.0
    %889 = vmatprep.subr.mxu0 0.0
    %890 = vmatpush2.msra.mxu0 0.0
    %891 = vmatprep.subr.mxu0 0.0
    %892 = vmatpush2.msra.mxu0 0.0
    %893 = vmatprep.subr.mxu0 0.0
    %894 = vmatpush2.msra.mxu0 0.0
    %895 = vmatprep.subr.mxu0 0.0
    %896 = vmatpush2.msra.mxu0 0.0
    %897 = vmatprep.subr.mxu0 0.0
    %898 = vmatpush2.msra.mxu0 0.0
    %899 = vmatprep.subr.mxu0 0.0
    %900 = vmatpush2.msra.mxu0 0.0
    %901 = vmatprep.subr.mxu0 0.0
    %902 = vmatpush2.msra.mxu0 0.0
    %903 = vmatprep.subr.mxu0 0.0
    %904 = vmatpush2.msra.mxu0 0.0
    %905 = vmatprep.subr.mxu0 0.0
    %906 = vmatpush2.msra.mxu0 0.0
    %907 = vmatprep.subr.mxu0 0.0
    %908 = vmatpush2.msra.mxu0 0.0
    %909 = vmatprep.subr.mxu0 0.0
    %910 = vmatpush2.msra.mxu0 0.0
    %911 = vmatprep.mubr.f32.mxu0 0.0
    %912 = vmatmul.mubr.f32.gmra.mxu0 %v845
    %v913 = vpop.f32.mrf.mxu0
    %v914 = vadd.f32 %v841, %v913
    %v915 = vpop.f32.mrf.mxu0
    %v916 = vadd.f32 %v842, %v915
    %917 = vdwg.mxu0
    %v918 = vxor.u32 %v914, 2147483648
    %v919 = vxor.u32 %v916, 2147483648
    %v920 = vmul.f32 %v918, 1.442695
    %v921 = vpow.pop %v920
    %v922 = vmul.f32 %v919, 1.442695
    %v923 = vpow.pop %v922
    %v924 = vadd.f32 %v921, 1.0
    %v925 = vadd.f32 %v923, 1.0
    %v926 = vrcp.pop %v924
    %v927 = vmul.f32 1.0, %v926
    %v928 = vrcp.pop %v925
    %v929 = vmul.f32 1.0, %v928
    %v930 = vmul.f32 %v929, 2.0
    %v931 = vsub.f32 %v930, 1.0
    %v932 = vmul.f32 %v927, %v833
    %v933 = vmul.f32 %v927, %v931
    %935 = vrot.lane.b32.xlu0 %v933, 64
    %v936 = vpop.permute.xlu0 %935
    %v938 = vadd.f32 %v932, %v936
    %v939 = vtanh.pop %v938
    %v940 = vmul.f32 %v929, %v939
    %942 = vrot.lane.b32.xlu0 %v940, 32
    %v943 = vpop.permute.xlu0 %942
    %945 = vst.msk [vmem:[#allocation2 + $0x30] sm:$0xff] %vm314, %v943
    %v946 = vld [vmem:[#allocation3 + $0x80] sm:$0xff]
    %v947 = vld [vmem:[#allocation3 + $0x88] sm:$0xff]
    %948 = vrot.lane.b32.xlu0 %v940, 64
    %v949 = vpop.permute.xlu0 %948
    %v950 = vsel %vm96, %v949, 0
    %952 = vmatprep.subr.mxu0 0.0
    %953 = vmatpush1.msra.mxu0 0.0
    %954 = vmatprep.subr.mxu0 0.0
    %955 = vmatpush1.msra.mxu0 0.0
    %956 = vmatprep.subr.mxu0 0.0
    %957 = vmatpush1.msra.mxu0 0.0
    %958 = vmatprep.subr.mxu0 0.0
    %959 = vmatpush1.msra.mxu0 0.0
    %960 = vmatprep.subr.mxu0 0.0
    %961 = vmatpush1.msra.mxu0 0.0
    %962 = vmatprep.subr.mxu0 0.0
    %963 = vmatpush1.msra.mxu0 0.0
    %964 = vmatprep.subr.mxu0 0.0
    %965 = vmatpush1.msra.mxu0 0.0
    %966 = vmatprep.subr.mxu0 0.0
    %967 = vmatpush1.msra.mxu0 0.0
    %968 = vmatprep.subr.mxu0 %v89
    %969 = vmatpush1.msra.mxu0 %v88
    %970 = vmatprep.subr.mxu0 %v87
    %971 = vmatpush1.msra.mxu0 %v86
    %972 = vmatprep.subr.mxu0 %v85
    %973 = vmatpush1.msra.mxu0 %v84
    %974 = vmatprep.subr.mxu0 %v83
    %975 = vmatpush1.msra.mxu0 %v82
    %976 = vmatprep.subr.mxu0 %v81
    %977 = vmatpush1.msra.mxu0 %v80
    %978 = vmatprep.subr.mxu0 %v79
    %979 = vmatpush1.msra.mxu0 %v78
    %980 = vmatprep.subr.mxu0 %v77
    %981 = vmatpush1.msra.mxu0 %v76
    %982 = vmatprep.subr.mxu0 %v75
    %983 = vmatpush1.msra.mxu0 %v74
    %984 = vmatprep.subr.mxu0 0.0
    %985 = vmatpush2.msra.mxu0 0.0
    %986 = vmatprep.subr.mxu0 0.0
    %987 = vmatpush2.msra.mxu0 0.0
    %988 = vmatprep.subr.mxu0 0.0
    %989 = vmatpush2.msra.mxu0 0.0
    %990 = vmatprep.subr.mxu0 0.0
    %991 = vmatpush2.msra.mxu0 0.0
    %992 = vmatprep.subr.mxu0 0.0
    %993 = vmatpush2.msra.mxu0 0.0
    %994 = vmatprep.subr.mxu0 0.0
    %995 = vmatpush2.msra.mxu0 0.0
    %996 = vmatprep.subr.mxu0 0.0
    %997 = vmatpush2.msra.mxu0 0.0
    %998 = vmatprep.subr.mxu0 0.0
    %999 = vmatpush2.msra.mxu0 0.0
    %1000 = vmatprep.subr.mxu0 0.0
    %1001 = vmatpush2.msra.mxu0 0.0
    %1002 = vmatprep.subr.mxu0 0.0
    %1003 = vmatpush2.msra.mxu0 0.0
    %1004 = vmatprep.subr.mxu0 0.0
    %1005 = vmatpush2.msra.mxu0 0.0
    %1006 = vmatprep.subr.mxu0 0.0
    %1007 = vmatpush2.msra.mxu0 0.0
    %1008 = vmatprep.subr.mxu0 0.0
    %1009 = vmatpush2.msra.mxu0 0.0
    %1010 = vmatprep.subr.mxu0 0.0
    %1011 = vmatpush2.msra.mxu0 0.0
    %1012 = vmatprep.subr.mxu0 0.0
    %1013 = vmatpush2.msra.mxu0 0.0
    %1014 = vmatprep.subr.mxu0 0.0
    %1015 = vmatpush2.msra.mxu0 0.0
    %1016 = vmatprep.mubr.f32.mxu0 0.0
    %1017 = vmatmul.mubr.f32.gmra.mxu0 %v950
    %v1018 = vpop.f32.mrf.mxu0
    %v1019 = vadd.f32 %v946, %v1018
    %v1020 = vpop.f32.mrf.mxu0
    %v1021 = vadd.f32 %v947, %v1020
    %1022 = vdwg.mxu0
    %v1023 = vxor.u32 %v1019, 2147483648
    %v1024 = vxor.u32 %v1021, 2147483648
    %v1025 = vmul.f32 %v1023, 1.442695
    %v1026 = vpow.pop %v1025
    %v1027 = vmul.f32 %v1024, 1.442695
    %v1028 = vpow.pop %v1027
    %v1029 = vadd.f32 %v1026, 1.0
    %v1030 = vadd.f32 %v1028, 1.0
    %v1031 = vrcp.pop %v1029
    %v1032 = vmul.f32 1.0, %v1031
    %v1033 = vrcp.pop %v1030
    %v1034 = vmul.f32 1.0, %v1033
    %v1035 = vmul.f32 %v1034, 2.0
    %v1036 = vsub.f32 %v1035, 1.0
    %v1037 = vmul.f32 %v1032, %v938
    %v1038 = vmul.f32 %v1032, %v1036
    %1040 = vrot.lane.b32.xlu0 %v1038, 64
    %v1041 = vpop.permute.xlu0 %1040
    %v1043 = vadd.f32 %v1037, %v1041
    %v1044 = vtanh.pop %v1043
    %v1045 = vmul.f32 %v1034, %v1044
    %1047 = vrot.lane.b32.xlu0 %v938, 64
    %v1048 = vpop.permute.xlu0 %1047
    %1051 = vrot.lane.b32.xlu0 %v1043, 64
    %v1052 = vpop.permute.xlu0 %1051
    %v1054 = vsel %vm93, %v1048, %v1052
    %1057 = vrot.lane.b32.xlu0 %v1045, 64
    %v1058 = vpop.permute.xlu0 %1057
    %v1060 = vsel %vm93, %v949, %v1058
    %1062 = vrot.lane.b32.xlu0 %v1060, 96
    %v1063 = vpop.permute.xlu0 %1062
    %1065 = vst.msk [vmem:[#allocation2 + $0x38] sm:$0xff] %vm314, %v1063
    %v1066 = vld [vmem:[#allocation2] sm:$0xff]
    %v1067 = vld [vmem:[#allocation2 + $0x8] sm:$0xff]
    %v1068 = vld [vmem:[#allocation2 + $0x10] sm:$0xff]
    %v1069 = vld [vmem:[#allocation2 + $0x18] sm:$0xff]
    %v1070 = vld [vmem:[#allocation2 + $0x20] sm:$0xff]
    %v1071 = vld [vmem:[#allocation2 + $0x28] sm:$0xff]
    %v1072 = vld [vmem:[#allocation2 + $0x30] sm:$0xff]
    %v1073 = vld [vmem:[#allocation2 + $0x38] sm:$0xff]
    %v1074 = vld [vmem:[#allocation9] sm:$0xff]
    %v1075 = vld [vmem:[#allocation9 + $0x8] sm:$0xff]
    %v1076 = vld [vmem:[#allocation9 + $0x10] sm:$0xff]
    %v1077 = vld [vmem:[#allocation9 + $0x18] sm:$0xff]
    %v1078 = vld [vmem:[%s4] sm:$0x1]
    %v1080 = vlaneseq
    %v1081 = vshrl.u32 %v1080, 7
    %v1082 = vsub.s32 0, %v1081
    %v1083 = vrot.slane %v1078, %v1082
    %v1086 = vsel %vm314, %v1066, 0
    %v1089 = vsel %vm314, %v1067, 0
    %v1092 = vsel %vm314, %v1068, 0
    %v1095 = vsel %vm314, %v1069, 0
    %v1098 = vsel %vm314, %v1070, 0
    %v1101 = vsel %vm314, %v1071, 0
    %v1104 = vsel %vm314, %v1072, 0
    %v1107 = vsel %vm314, %v1073, 0
    %1109 = vmatprep.subr.mxu0 0.0
    %1110 = vmatpush1.msra.mxu0 0.0
    %1111 = vmatprep.subr.mxu0 0.0
    %1112 = vmatpush1.msra.mxu0 0.0
    %1113 = vmatprep.subr.mxu0 0.0
    %1114 = vmatpush1.msra.mxu0 0.0
    %1115 = vmatprep.subr.mxu0 0.0
    %1116 = vmatpush1.msra.mxu0 0.0
    %1117 = vmatprep.subr.mxu0 0.0
    %1118 = vmatpush1.msra.mxu0 0.0
    %1119 = vmatprep.subr.mxu0 0.0
    %1120 = vmatpush1.msra.mxu0 0.0
    %1121 = vmatprep.subr.mxu0 0.0
    %1122 = vmatpush1.msra.mxu0 0.0
    %1123 = vmatprep.subr.mxu0 0.0
    %1124 = vmatpush1.msra.mxu0 0.0
    %1125 = vmatprep.subr.mxu0 0.0
    %1126 = vmatpush1.msra.mxu0 0.0
    %1127 = vmatprep.subr.mxu0 0.0
    %1128 = vmatpush1.msra.mxu0 0.0
    %1129 = vmatprep.subr.mxu0 0.0
    %1130 = vmatpush1.msra.mxu0 0.0
    %1131 = vmatprep.subr.mxu0 0.0
    %1132 = vmatpush1.msra.mxu0 0.0
    %1133 = vmatprep.subr.mxu0 0.0
    %1134 = vmatpush1.msra.mxu0 %v1077
    %1135 = vmatprep.subr.mxu0 0.0
    %1136 = vmatpush1.msra.mxu0 %v1076
    %1137 = vmatprep.subr.mxu0 0.0
    %1138 = vmatpush1.msra.mxu0 %v1075
    %1139 = vmatprep.subr.mxu0 0.0
    %1140 = vmatpush1.msra.mxu0 %v1074
    %1141 = vmatprep.subr.mxu0 0.0
    %1142 = vmatpush2.msra.mxu0 0.0
    %1143 = vmatprep.subr.mxu0 0.0
    %1144 = vmatpush2.msra.mxu0 0.0
    %1145 = vmatprep.subr.mxu0 0.0
    %1146 = vmatpush2.msra.mxu0 0.0
    %1147 = vmatprep.subr.mxu0 0.0
    %1148 = vmatpush2.msra.mxu0 0.0
    %1149 = vmatprep.subr.mxu0 0.0
    %1150 = vmatpush2.msra.mxu0 0.0
    %1151 = vmatprep.subr.mxu0 0.0
    %1152 = vmatpush2.msra.mxu0 0.0
    %1153 = vmatprep.subr.mxu0 0.0
    %1154 = vmatpush2.msra.mxu0 0.0
    %1155 = vmatprep.subr.mxu0 0.0
    %1156 = vmatpush2.msra.mxu0 0.0
    %1157 = vmatprep.subr.mxu0 0.0
    %1158 = vmatpush2.msra.mxu0 0.0
    %1159 = vmatprep.subr.mxu0 0.0
    %1160 = vmatpush2.msra.mxu0 0.0
    %1161 = vmatprep.subr.mxu0 0.0
    %1162 = vmatpush2.msra.mxu0 0.0
    %1163 = vmatprep.subr.mxu0 0.0
    %1164 = vmatpush2.msra.mxu0 0.0
    %1165 = vmatprep.subr.mxu0 0.0
    %1166 = vmatpush2.msra.mxu0 0.0
    %1167 = vmatprep.subr.mxu0 0.0
    %1168 = vmatpush2.msra.mxu0 0.0
    %1169 = vmatprep.subr.mxu0 0.0
    %1170 = vmatpush2.msra.mxu0 0.0
    %1171 = vmatprep.subr.mxu0 0.0
    %1172 = vmatpush2.msra.mxu0 0.0
    %1173 = vmatprep.mubr.f32.mxu0 0.0
    %1174 = vmatmul.mubr.f32.gmra.mxu0 %v1086
    %v1175 = vpop.f32.mrf.mxu0
    %v1176 = vadd.f32 %v1083, %v1175
    %v1177 = vpop.f32.mrf.mxu0
    %1178 = vmatprep.mubr.f32.mxu0 0.0
    %1179 = vmatmul.mubr.f32.gmra.mxu0 %v1089
    %v1180 = vpop.f32.mrf.mxu0
    %v1181 = vadd.f32 %v1083, %v1180
    %v1182 = vpop.f32.mrf.mxu0
    %1183 = vmatprep.mubr.f32.mxu0 0.0
    %1184 = vmatmul.mubr.f32.gmra.mxu0 %v1092
    %v1185 = vpop.f32.mrf.mxu0
    %v1186 = vadd.f32 %v1083, %v1185
    %v1187 = vpop.f32.mrf.mxu0
    %1188 = vmatprep.mubr.f32.mxu0 0.0
    %1189 = vmatmul.mubr.f32.gmra.mxu0 %v1095
    %v1190 = vpop.f32.mrf.mxu0
    %v1191 = vadd.f32 %v1083, %v1190
    %v1192 = vpop.f32.mrf.mxu0
    %1193 = vmatprep.mubr.f32.mxu0 0.0
    %1194 = vmatmul.mubr.f32.gmra.mxu0 %v1098
    %v1195 = vpop.f32.mrf.mxu0
    %v1196 = vadd.f32 %v1083, %v1195
    %v1197 = vpop.f32.mrf.mxu0
    %1198 = vmatprep.mubr.f32.mxu0 0.0
    %1199 = vmatmul.mubr.f32.gmra.mxu0 %v1101
    %v1200 = vpop.f32.mrf.mxu0
    %v1201 = vadd.f32 %v1083, %v1200
    %v1202 = vpop.f32.mrf.mxu0
    %1203 = vmatprep.mubr.f32.mxu0 0.0
    %1204 = vmatmul.mubr.f32.gmra.mxu0 %v1104
    %v1205 = vpop.f32.mrf.mxu0
    %v1206 = vadd.f32 %v1083, %v1205
    %v1207 = vpop.f32.mrf.mxu0
    %1208 = vmatprep.mubr.f32.mxu0 0.0
    %1209 = vmatmul.mubr.f32.gmra.mxu0 %v1107
    %v1210 = vpop.f32.mrf.mxu0
    %v1211 = vadd.f32 %v1083, %v1210
    %v1212 = vpop.f32.mrf.mxu0
    %1213 = vdwg.mxu0
    %1214 = vst [vmem:[#allocation11] sm:$0xff] %v1176
    %1215 = vst [vmem:[#allocation11 + $0x8] sm:$0xff] %v1181
    %1216 = vst [vmem:[#allocation11 + $0x10] sm:$0xff] %v1186
    %1217 = vst [vmem:[#allocation11 + $0x18] sm:$0xff] %v1191
    %1218 = vst [vmem:[#allocation11 + $0x20] sm:$0xff] %v1196
    %1219 = vst [vmem:[#allocation11 + $0x28] sm:$0xff] %v1201
    %1220 = vst [vmem:[#allocation11 + $0x30] sm:$0xff] %v1206
    %1221 = vst [vmem:[#allocation11 + $0x38] sm:$0xff] %v1211
    %1223 = vrot.lane.b32.xlu0 %v1054, 64
    %v1224 = vpop.permute.xlu0 %1223
    %v1226 = vsel %vm96, %v1060, %v1224
    %1227 = vst [vmem:[#allocation11 + $0x40] sm:$0xff] %v1226
    // Predicated region
    $region38: #{tpu_custom_call.1} parent=1 // pred_check
      _
    $region39: #{tpu_custom_call.1} parent=1 // pred_check_branch
      %1229 = sbr.rel (0) target = $region41
    $region40: #{tpu_custom_call.1} parent=1 // pred_region
      %s1231 = ssub.s32 1152, 1152
      %1232 = vsyncadd [#allocation5], %s1231
      %s1233 = sshll.u32 [#allocation11], 4
      %s1234 = int_to_ptr.vmem [resolvable:$true] %s1233
      %1239 = dma.vmem_to_hbm [thread:$0]  %s1234, 1152, %s5, [#allocation5], 128, 128, 8
    $region41: #{tpu_custom_call.1} parent=1 // pred_fallthru
      _
    // Predicated region
    $region42: #{tpu_custom_call.1} parent=1 // pred_check
      _
    $region43: #{tpu_custom_call.1} parent=1 // pred_check_branch
      %1241 = sbr.rel (0) target = $region45
    $region44: #{tpu_custom_call.1} parent=1 // pred_region
      %1242 = dma.done [#allocation5], 1152
    $region45: #{tpu_custom_call.1} parent=1 // pred_fallthru
      _
    %1243 = vsyncpa [#allocation4], 1
    %1244 = vsyncpa [#allocation7], 1
    %1245 = vsyncpa [#allocation10], 1
    %1246 = vsyncpa [#allocation5], 1

</llo_original>
